<compile_context>
chip_gen: v7x
topology: tpu7x:2x2x1
jax: 0.10.0
libtpu: 0.0.40
codegen_flags: <defaults>
</compile_context>

<pallas_src>
import functools

import jax
import jax.numpy as jnp
from jax.experimental import pallas as pl
from jax.experimental.pallas import tpu as pltpu

LEAKY_SLOPE = 0.01   # torch.nn.LeakyReLU default
CP = 128             # channel padding -> lane-dense activations / MXU-wide weights


# ----------------------------------------------------------------------------
# Fused Pallas kernel: all blocks + final last-timestep gather.
# ----------------------------------------------------------------------------
def _tcn_fused_kernel(lengths_ref,                       # SMEM [B]  (scalar prefetch)
                      x_ref,                             # VMEM [TB, T, CP]
                      w1_ref, b1_ref, w2_ref, b2_ref, br_ref,
                      out_ref,                           # VMEM [TB, CP]
                      *, dilations, use_res):
    TB, T, C = x_ref.shape
    R = TB * T
    g = pl.program_id(0)

    def leaky(a):
        return jnp.where(a > 0, a, LEAKY_SLOPE * a)

    # Per-row time index of the flattened [TB*T, CP] activation slab (hoisted once).
    t_idx = jax.lax.broadcasted_iota(jnp.int32, (TB, T, C), 1).reshape(R, C)

    def causal_shift(a, d, keep):
        # out[b*T + t] = a[b*T + t - d] for t >= d, zeros otherwise ("chomp").
        if d >= T:
            return jnp.zeros_like(a)
        rolled = pltpu.roll(a, shift=d, axis=0)          # XLU sublane rotation
        return jnp.where(keep, rolled, jnp.zeros_like(rolled))

    x = x_ref[...].reshape(R, C)                         # stays in VMEM/vregs
    for i, d in enumerate(dilations):
        keep = t_idx >= d
        # conv1: both dilation taps (+ optional residual 1x1) in ONE wide matmul.
        w1 = w1_ref[i] if use_res[i] else w1_ref[i, :, :2 * C]
        y = jnp.dot(x, w1, preferred_element_type=jnp.float32)
        h = leaky(causal_shift(y[:, :C], d, keep) + y[:, C:2 * C] + b1_ref[i])
        # conv2: both taps merged the same way.
        z = jnp.dot(h, w2_ref[i], preferred_element_type=jnp.float32)
        oc = leaky(causal_shift(z[:, :C], d, keep) + z[:, C:] + b2_ref[i])
        res = (y[:, 2 * C:] + br_ref[i]) if use_res[i] else x
        x = oc + res

    # Fused gather of the last valid timestep: out[b] = x[b, lengths[b]-1, :].
    # One-hot masked sublane reduce per batch row -> single unmasked lane-dense store.
    x3 = x.reshape(TB, T, C)
    tt = jax.lax.broadcasted_iota(jnp.int32, (T, C), 0)
    rows = []
    for b in range(TB):
        t = jnp.clip(lengths_ref[g * TB + b] - 1, 0, T - 1)   # guard lengths >= 1
        rows.append(jnp.sum(jnp.where(tt == t, x3[b], 0.0), axis=0, keepdims=True))
    out_ref[...] = jnp.concatenate(rows, axis=0)


# ----------------------------------------------------------------------------
# Parameter construction (deterministic, synthetic) — mirrors CausalCNN.__init__
# ----------------------------------------------------------------------------
def init_params(key, in_channels, channels, depth, out_channels, kernel_size=2):
    assert kernel_size == 2, "CausalCNNEncoder default kernel_size=2"
    blocks = []
    dilation = 1
    c_in = in_channels
    for i in range(depth + 1):
        c_out = out_channels if i == depth else channels
        key, *ks = jax.random.split(key, 8)
        s = 0.1
        p = {
            "w1a": jax.random.normal(ks[0], (c_in, c_out), jnp.float32) * s,
            "w1b": jax.random.normal(ks[1], (c_in, c_out), jnp.float32) * s,
            "b1":  jax.random.normal(ks[2], (1, c_out), jnp.float32) * s,
            "w2a": jax.random.normal(ks[3], (c_out, c_out), jnp.float32) * s,
            "w2b": jax.random.normal(ks[4], (c_out, c_out), jnp.float32) * s,
            "b2":  jax.random.normal(ks[5], (1, c_out), jnp.float32) * s,
        }
        use_res = c_in != c_out
        if use_res:
            p["wr"] = jax.random.normal(ks[6], (c_in, c_out), jnp.float32) * s
            p["br"] = jnp.zeros((1, c_out), jnp.float32)
        blocks.append((p, dilation, use_res))
        dilation *= 2
        c_in = c_out
    return blocks


# ----------------------------------------------------------------------------
# Host-side packing: pad channels to 128 and concat taps -> uniform stacked weights.
# ----------------------------------------------------------------------------
def _pack_params(blocks):
    nb = len(blocks)
    w1 = jnp.zeros((nb, CP, 3 * CP), jnp.float32)   # [w1a | w1b | wr]
    b1 = jnp.zeros((nb, 1, CP), jnp.float32)
    w2 = jnp.zeros((nb, CP, 2 * CP), jnp.float32)   # [w2a | w2b]
    b2 = jnp.zeros((nb, 1, CP), jnp.float32)
    br = jnp.zeros((nb, 1, CP), jnp.float32)
    dils, flags = [], []
    for i, (p, d, use_res) in enumerate(blocks):
        ci, co = p["w1a"].shape
        assert ci <= CP and co <= CP
        w1 = w1.at[i, :ci, 0 * CP:0 * CP + co].set(p["w1a"])
        w1 = w1.at[i, :ci, 1 * CP:1 * CP + co].set(p["w1b"])
        b1 = b1.at[i, 0, :co].set(p["b1"][0])
        w2 = w2.at[i, :co, 0 * CP:0 * CP + co].set(p["w2a"])
        w2 = w2.at[i, :co, 1 * CP:1 * CP + co].set(p["w2b"])
        b2 = b2.at[i, 0, :co].set(p["b2"][0])
        if use_res:
            w1 = w1.at[i, :ci, 2 * CP:2 * CP + co].set(p["wr"])
            br = br.at[i, 0, :co].set(p["br"][0])
        dils.append(int(d))
        flags.append(bool(use_res))
    return w1, b1, w2, b2, br, tuple(dils), tuple(flags)


# ----------------------------------------------------------------------------
# TcnQueryEncoder.forward
# ----------------------------------------------------------------------------
def tcn_query_encoder(sequences, lengths, blocks):
    """sequences: [B, T, n_features]; lengths: [B]  ->  [B, out_channels]."""
    B, T, F = sequences.shape
    assert F <= CP
    c_out = blocks[-1][0]["w2a"].shape[1]

    # Pad channels to 128 lanes once (permute(0,2,1) folded into layout).
    x = jnp.zeros((B, T, CP), jnp.float32).at[:, :, :F].set(
        sequences.astype(jnp.float32))
    w1, b1, w2, b2, br, dils, flags = _pack_params(blocks)
    lengths = lengths.astype(jnp.int32)

    tb = 8 if B % 8 == 0 else B                      # batch tile (parallel grid axis)
    grid = (B // tb,)
    nb = len(blocks)

    flops = sum(2 * B * T * CP * ((3 if f else 2) * CP) + 2 * B * T * CP * (2 * CP)
                for f in flags)
    bytes_accessed = 4 * (x.size + w1.size + b1.size + w2.size + b2.size
                          + br.size + B * CP + B)

    kernel = functools.partial(_tcn_fused_kernel, dilations=dils, use_res=flags)
    out = pl.pallas_call(
        kernel,
        out_shape=jax.ShapeDtypeStruct((B, CP), jnp.float32),
        grid_spec=pltpu.PrefetchScalarGridSpec(
            num_scalar_prefetch=1,                   # lengths -> SMEM
            grid=grid,
            in_specs=[
                pl.BlockSpec((tb, T, CP), lambda g, lens: (g, 0, 0)),        # x
                pl.BlockSpec((nb, CP, 3 * CP), lambda g, lens: (0, 0, 0)),   # W1|wr
                pl.BlockSpec((nb, 1, CP), lambda g, lens: (0, 0, 0)),        # b1
                pl.BlockSpec((nb, CP, 2 * CP), lambda g, lens: (0, 0, 0)),   # W2
                pl.BlockSpec((nb, 1, CP), lambda g, lens: (0, 0, 0)),        # b2
                pl.BlockSpec((nb, 1, CP), lambda g, lens: (0, 0, 0)),        # br
            ],
            out_specs=pl.BlockSpec((tb, CP), lambda g, lens: (g, 0)),
        ),
        compiler_params=pltpu.CompilerParams(
            dimension_semantics=("parallel",),
            vmem_limit_bytes=32 * 1024 * 1024,
        ),
        cost_estimate=pl.CostEstimate(flops=flops, transcendentals=0,
                                      bytes_accessed=bytes_accessed),
    )(lengths, x, w1, b1, w2, b2, br)
    return out[:, :c_out]


# ----------------------------------------------------------------------------
# Pure-JAX reference (same math, no Pallas) for correctness check.
# ----------------------------------------------------------------------------
def _ref_block(x, p, d, use_res):
    B, T, _ = x.shape
    dd = min(d, T)

    def shift(a):
        pad = jnp.zeros((B, dd, a.shape[-1]), a.dtype)
        return jnp.concatenate([pad, a[:, :T - dd, :]], axis=1)

    def leaky(a):
        return jnp.where(a > 0, a, LEAKY_SLOPE * a)

    h = leaky(shift(x) @ p["w1a"] + x @ p["w1b"] + p["b1"][None])
    oc = leaky(shift(h) @ p["w2a"] + h @ p["w2b"] + p["b2"][None])
    res = (x @ p["wr"] + p["br"][None]) if use_res else x
    return oc + res


if __name__ == "__main__":
    B, T = 2, 16
    num_channels, num_layers, kernel_size = 32, 3, 2   # small-shape version of defaults (64, 5, 2)

    key = jax.random.PRNGKey(0)
    kp, kx = jax.random.split(key, 2)
    blocks = init_params(kp, in_channels=1, channels=num_channels,
                         depth=num_layers, out_channels=num_channels,
                         kernel_size=kernel_size)

    sequences = jax.random.normal(kx, (B, T, 1), jnp.float32)  # [batch, seq_len, n_features]
    lengths = jnp.array([T, T // 2], jnp.int32)                # assumed >= 1

    out = tcn_query_encoder(sequences, lengths, blocks)
    out = jax.block_until_ready(out)

    # reference check
    xr = sequences
    for p, d, use_res in blocks:
        xr = _ref_block(xr, p, d, use_res)
    ref = jnp.take_along_axis(xr, (lengths - 1)[:, None, None], axis=1)[:, 0, :]

    assert out.shape == (B, num_channels), out.shape
    assert jnp.allclose(out, ref, atol=1e-4, rtol=1e-4), float(jnp.max(jnp.abs(out - ref)))
    print("KERNEL_OK")
</pallas_src>

<mosaic_0001>
module attributes {stable_mosaic.version = 11 : i64} {
  func.func @_tcn_fused_kernel(%arg0: i32, %arg1: memref<2xi32, #tpu.memory_space<smem>>, %arg2: memref<2x16x128xf32, #tpu.memory_space<vmem>>, %arg3: memref<4x128x384xf32, #tpu.memory_space<vmem>>, %arg4: memref<4x1x128xf32, #tpu.memory_space<vmem>>, %arg5: memref<4x128x256xf32, #tpu.memory_space<vmem>>, %arg6: memref<4x1x128xf32, #tpu.memory_space<vmem>>, %arg7: memref<4x1x128xf32, #tpu.memory_space<vmem>>, %arg8: memref<2x128xf32, #tpu.memory_space<vmem>>) attributes {dimension_semantics = [#tpu.dimension_semantics<parallel>], iteration_bounds = array<i64: 1>, scalar_prefetch = 1 : i64, scratch_operands = 0 : i64, tpu.core_type = #tpu.core_type<tc>, window_params = [{transform_indices = @transform_0, window_bounds = array<i64: 2, 16, 128>}, {pipeline_mode = #tpu.pipeline_mode<synchronous>, transform_indices = @transform_1, window_bounds = array<i64: 4, 128, 384>}, {pipeline_mode = #tpu.pipeline_mode<synchronous>, transform_indices = @transform_2, window_bounds = array<i64: 4, 1, 128>}, {pipeline_mode = #tpu.pipeline_mode<synchronous>, transform_indices = @transform_3, window_bounds = array<i64: 4, 128, 256>}, {pipeline_mode = #tpu.pipeline_mode<synchronous>, transform_indices = @transform_4, window_bounds = array<i64: 4, 1, 128>}, {pipeline_mode = #tpu.pipeline_mode<synchronous>, transform_indices = @transform_5, window_bounds = array<i64: 4, 1, 128>}, {transform_indices = @transform_6, window_bounds = array<i64: 2, 128>}]} {
    %0 = tpu.iota {dimensions = array<i32: 1>} : vector<2x16x128xi32>
    %1 = vector.shape_cast %0 : vector<2x16x128xi32> to vector<32x128xi32>
    %c0 = arith.constant 0 : index
    %c0_0 = arith.constant 0 : index
    %c0_1 = arith.constant 0 : index
    %2 = vector.load %arg2[%c0, %c0_0, %c0_1] : memref<2x16x128xf32, #tpu.memory_space<vmem>>, vector<2x16x128xf32>
    %3 = vector.shape_cast %2 : vector<2x16x128xf32> to vector<32x128xf32>
    %c1_i32 = arith.constant 1 : i32
    %4 = vector.broadcast %c1_i32 : i32 to vector<32x128xi32>
    %5 = arith.cmpi sge, %1, %4 : vector<32x128xi32>
    %c0_2 = arith.constant 0 : index
    %c0_3 = arith.constant 0 : index
    %c0_4 = arith.constant 0 : index
    %6 = vector.load %arg3[%c0_2, %c0_3, %c0_4] : memref<4x128x384xf32, #tpu.memory_space<vmem>>, vector<1x128x384xf32>
    %7 = vector.shape_cast %6 : vector<1x128x384xf32> to vector<128x384xf32>
    %cst = arith.constant dense<0.000000e+00> : vector<32x384xf32>
    %8 = tpu.matmul %3, %7, %cst {dimension_numbers = #tpu.dot_dimension_numbers<[1], [0], [0], [1], [0, 0, 1, 1], [], []>} : vector<32x128xf32>, vector<128x384xf32>, vector<32x384xf32> -> vector<32x384xf32>
    %9 = vector.extract_strided_slice %8 {offsets = [0, 0], sizes = [32, 128], strides = [1, 1]} : vector<32x384xf32> to vector<32x128xf32>
    %c1_i32_5 = arith.constant 1 : i32
    %10 = tpu.dynamic_rotate %9 by %c1_i32_5 dim 0 : vector<32x128xf32>, i32 -> vector<32x128xf32>
    %cst_6 = arith.constant 0.000000e+00 : f32
    %11 = vector.broadcast %cst_6 : f32 to vector<32x128xf32>
    %12 = arith.select %5, %10, %11 : vector<32x128xi1>, vector<32x128xf32>
    %13 = vector.extract_strided_slice %8 {offsets = [0, 128], sizes = [32, 128], strides = [1, 1]} : vector<32x384xf32> to vector<32x128xf32>
    %14 = arith.addf %12, %13 : vector<32x128xf32>
    %c0_7 = arith.constant 0 : index
    %c0_8 = arith.constant 0 : index
    %c0_9 = arith.constant 0 : index
    %15 = vector.load %arg4[%c0_7, %c0_8, %c0_9] : memref<4x1x128xf32, #tpu.memory_space<vmem>>, vector<1x1x128xf32>
    %16 = vector.shape_cast %15 : vector<1x1x128xf32> to vector<1x128xf32>
    %17 = vector.broadcast %16 : vector<1x128xf32> to vector<32x128xf32>
    %18 = arith.addf %14, %17 : vector<32x128xf32>
    %cst_10 = arith.constant 0.000000e+00 : f32
    %19 = vector.broadcast %cst_10 : f32 to vector<32x128xf32>
    %20 = arith.cmpf ogt, %18, %19 : vector<32x128xf32>
    %cst_11 = arith.constant 0.00999999977 : f32
    %21 = vector.broadcast %cst_11 : f32 to vector<32x128xf32>
    %22 = arith.mulf %21, %18 : vector<32x128xf32>
    %23 = arith.select %20, %18, %22 : vector<32x128xi1>, vector<32x128xf32>
    %c0_12 = arith.constant 0 : index
    %c0_13 = arith.constant 0 : index
    %c0_14 = arith.constant 0 : index
    %24 = vector.load %arg5[%c0_12, %c0_13, %c0_14] : memref<4x128x256xf32, #tpu.memory_space<vmem>>, vector<1x128x256xf32>
    %25 = vector.shape_cast %24 : vector<1x128x256xf32> to vector<128x256xf32>
    %cst_15 = arith.constant dense<0.000000e+00> : vector<32x256xf32>
    %26 = tpu.matmul %23, %25, %cst_15 {dimension_numbers = #tpu.dot_dimension_numbers<[1], [0], [0], [1], [0, 0, 1, 1], [], []>} : vector<32x128xf32>, vector<128x256xf32>, vector<32x256xf32> -> vector<32x256xf32>
    %27 = vector.extract_strided_slice %26 {offsets = [0, 0], sizes = [32, 128], strides = [1, 1]} : vector<32x256xf32> to vector<32x128xf32>
    %c1_i32_16 = arith.constant 1 : i32
    %28 = tpu.dynamic_rotate %27 by %c1_i32_16 dim 0 : vector<32x128xf32>, i32 -> vector<32x128xf32>
    %cst_17 = arith.constant 0.000000e+00 : f32
    %29 = vector.broadcast %cst_17 : f32 to vector<32x128xf32>
    %30 = arith.select %5, %28, %29 : vector<32x128xi1>, vector<32x128xf32>
    %31 = vector.extract_strided_slice %26 {offsets = [0, 128], sizes = [32, 128], strides = [1, 1]} : vector<32x256xf32> to vector<32x128xf32>
    %32 = arith.addf %30, %31 : vector<32x128xf32>
    %c0_18 = arith.constant 0 : index
    %c0_19 = arith.constant 0 : index
    %c0_20 = arith.constant 0 : index
    %33 = vector.load %arg6[%c0_18, %c0_19, %c0_20] : memref<4x1x128xf32, #tpu.memory_space<vmem>>, vector<1x1x128xf32>
    %34 = vector.shape_cast %33 : vector<1x1x128xf32> to vector<1x128xf32>
    %35 = vector.broadcast %34 : vector<1x128xf32> to vector<32x128xf32>
    %36 = arith.addf %32, %35 : vector<32x128xf32>
    %cst_21 = arith.constant 0.000000e+00 : f32
    %37 = vector.broadcast %cst_21 : f32 to vector<32x128xf32>
    %38 = arith.cmpf ogt, %36, %37 : vector<32x128xf32>
    %cst_22 = arith.constant 0.00999999977 : f32
    %39 = vector.broadcast %cst_22 : f32 to vector<32x128xf32>
    %40 = arith.mulf %39, %36 : vector<32x128xf32>
    %41 = arith.select %38, %36, %40 : vector<32x128xi1>, vector<32x128xf32>
    %42 = vector.extract_strided_slice %8 {offsets = [0, 256], sizes = [32, 128], strides = [1, 1]} : vector<32x384xf32> to vector<32x128xf32>
    %c0_23 = arith.constant 0 : index
    %c0_24 = arith.constant 0 : index
    %c0_25 = arith.constant 0 : index
    %43 = vector.load %arg7[%c0_23, %c0_24, %c0_25] : memref<4x1x128xf32, #tpu.memory_space<vmem>>, vector<1x1x128xf32>
    %44 = vector.shape_cast %43 : vector<1x1x128xf32> to vector<1x128xf32>
    %45 = vector.broadcast %44 : vector<1x128xf32> to vector<32x128xf32>
    %46 = arith.addf %42, %45 : vector<32x128xf32>
    %47 = arith.addf %41, %46 : vector<32x128xf32>
    %c2_i32 = arith.constant 2 : i32
    %48 = vector.broadcast %c2_i32 : i32 to vector<32x128xi32>
    %49 = arith.cmpi sge, %1, %48 : vector<32x128xi32>
    %c1 = arith.constant 1 : index
    %c0_26 = arith.constant 0 : index
    %c0_27 = arith.constant 0 : index
    %50 = vector.load %arg3[%c1, %c0_26, %c0_27] : memref<4x128x384xf32, #tpu.memory_space<vmem>>, vector<1x128x256xf32>
    %51 = vector.shape_cast %50 : vector<1x128x256xf32> to vector<128x256xf32>
    %cst_28 = arith.constant dense<0.000000e+00> : vector<32x256xf32>
    %52 = tpu.matmul %47, %51, %cst_28 {dimension_numbers = #tpu.dot_dimension_numbers<[1], [0], [0], [1], [0, 0, 1, 1], [], []>} : vector<32x128xf32>, vector<128x256xf32>, vector<32x256xf32> -> vector<32x256xf32>
    %53 = vector.extract_strided_slice %52 {offsets = [0, 0], sizes = [32, 128], strides = [1, 1]} : vector<32x256xf32> to vector<32x128xf32>
    %c2_i32_29 = arith.constant 2 : i32
    %54 = tpu.dynamic_rotate %53 by %c2_i32_29 dim 0 : vector<32x128xf32>, i32 -> vector<32x128xf32>
    %cst_30 = arith.constant 0.000000e+00 : f32
    %55 = vector.broadcast %cst_30 : f32 to vector<32x128xf32>
    %56 = arith.select %49, %54, %55 : vector<32x128xi1>, vector<32x128xf32>
    %57 = vector.extract_strided_slice %52 {offsets = [0, 128], sizes = [32, 128], strides = [1, 1]} : vector<32x256xf32> to vector<32x128xf32>
    %58 = arith.addf %56, %57 : vector<32x128xf32>
    %c1_31 = arith.constant 1 : index
    %c0_32 = arith.constant 0 : index
    %c0_33 = arith.constant 0 : index
    %59 = vector.load %arg4[%c1_31, %c0_32, %c0_33] : memref<4x1x128xf32, #tpu.memory_space<vmem>>, vector<1x1x128xf32>
    %60 = vector.shape_cast %59 : vector<1x1x128xf32> to vector<1x128xf32>
    %61 = vector.broadcast %60 : vector<1x128xf32> to vector<32x128xf32>
    %62 = arith.addf %58, %61 : vector<32x128xf32>
    %cst_34 = arith.constant 0.000000e+00 : f32
    %63 = vector.broadcast %cst_34 : f32 to vector<32x128xf32>
    %64 = arith.cmpf ogt, %62, %63 : vector<32x128xf32>
    %cst_35 = arith.constant 0.00999999977 : f32
    %65 = vector.broadcast %cst_35 : f32 to vector<32x128xf32>
    %66 = arith.mulf %65, %62 : vector<32x128xf32>
    %67 = arith.select %64, %62, %66 : vector<32x128xi1>, vector<32x128xf32>
    %c1_36 = arith.constant 1 : index
    %c0_37 = arith.constant 0 : index
    %c0_38 = arith.constant 0 : index
    %68 = vector.load %arg5[%c1_36, %c0_37, %c0_38] : memref<4x128x256xf32, #tpu.memory_space<vmem>>, vector<1x128x256xf32>
    %69 = vector.shape_cast %68 : vector<1x128x256xf32> to vector<128x256xf32>
    %cst_39 = arith.constant dense<0.000000e+00> : vector<32x256xf32>
    %70 = tpu.matmul %67, %69, %cst_39 {dimension_numbers = #tpu.dot_dimension_numbers<[1], [0], [0], [1], [0, 0, 1, 1], [], []>} : vector<32x128xf32>, vector<128x256xf32>, vector<32x256xf32> -> vector<32x256xf32>
    %71 = vector.extract_strided_slice %70 {offsets = [0, 0], sizes = [32, 128], strides = [1, 1]} : vector<32x256xf32> to vector<32x128xf32>
    %c2_i32_40 = arith.constant 2 : i32
    %72 = tpu.dynamic_rotate %71 by %c2_i32_40 dim 0 : vector<32x128xf32>, i32 -> vector<32x128xf32>
    %cst_41 = arith.constant 0.000000e+00 : f32
    %73 = vector.broadcast %cst_41 : f32 to vector<32x128xf32>
    %74 = arith.select %49, %72, %73 : vector<32x128xi1>, vector<32x128xf32>
    %75 = vector.extract_strided_slice %70 {offsets = [0, 128], sizes = [32, 128], strides = [1, 1]} : vector<32x256xf32> to vector<32x128xf32>
    %76 = arith.addf %74, %75 : vector<32x128xf32>
    %c1_42 = arith.constant 1 : index
    %c0_43 = arith.constant 0 : index
    %c0_44 = arith.constant 0 : index
    %77 = vector.load %arg6[%c1_42, %c0_43, %c0_44] : memref<4x1x128xf32, #tpu.memory_space<vmem>>, vector<1x1x128xf32>
    %78 = vector.shape_cast %77 : vector<1x1x128xf32> to vector<1x128xf32>
    %79 = vector.broadcast %78 : vector<1x128xf32> to vector<32x128xf32>
    %80 = arith.addf %76, %79 : vector<32x128xf32>
    %cst_45 = arith.constant 0.000000e+00 : f32
    %81 = vector.broadcast %cst_45 : f32 to vector<32x128xf32>
    %82 = arith.cmpf ogt, %80, %81 : vector<32x128xf32>
    %cst_46 = arith.constant 0.00999999977 : f32
    %83 = vector.broadcast %cst_46 : f32 to vector<32x128xf32>
    %84 = arith.mulf %83, %80 : vector<32x128xf32>
    %85 = arith.select %82, %80, %84 : vector<32x128xi1>, vector<32x128xf32>
    %86 = arith.addf %85, %47 : vector<32x128xf32>
    %c4_i32 = arith.constant 4 : i32
    %87 = vector.broadcast %c4_i32 : i32 to vector<32x128xi32>
    %88 = arith.cmpi sge, %1, %87 : vector<32x128xi32>
    %c2 = arith.constant 2 : index
    %c0_47 = arith.constant 0 : index
    %c0_48 = arith.constant 0 : index
    %89 = vector.load %arg3[%c2, %c0_47, %c0_48] : memref<4x128x384xf32, #tpu.memory_space<vmem>>, vector<1x128x256xf32>
    %90 = vector.shape_cast %89 : vector<1x128x256xf32> to vector<128x256xf32>
    %cst_49 = arith.constant dense<0.000000e+00> : vector<32x256xf32>
    %91 = tpu.matmul %86, %90, %cst_49 {dimension_numbers = #tpu.dot_dimension_numbers<[1], [0], [0], [1], [0, 0, 1, 1], [], []>} : vector<32x128xf32>, vector<128x256xf32>, vector<32x256xf32> -> vector<32x256xf32>
    %92 = vector.extract_strided_slice %91 {offsets = [0, 0], sizes = [32, 128], strides = [1, 1]} : vector<32x256xf32> to vector<32x128xf32>
    %c4_i32_50 = arith.constant 4 : i32
    %93 = tpu.dynamic_rotate %92 by %c4_i32_50 dim 0 : vector<32x128xf32>, i32 -> vector<32x128xf32>
    %cst_51 = arith.constant 0.000000e+00 : f32
    %94 = vector.broadcast %cst_51 : f32 to vector<32x128xf32>
    %95 = arith.select %88, %93, %94 : vector<32x128xi1>, vector<32x128xf32>
    %96 = vector.extract_strided_slice %91 {offsets = [0, 128], sizes = [32, 128], strides = [1, 1]} : vector<32x256xf32> to vector<32x128xf32>
    %97 = arith.addf %95, %96 : vector<32x128xf32>
    %c2_52 = arith.constant 2 : index
    %c0_53 = arith.constant 0 : index
    %c0_54 = arith.constant 0 : index
    %98 = vector.load %arg4[%c2_52, %c0_53, %c0_54] : memref<4x1x128xf32, #tpu.memory_space<vmem>>, vector<1x1x128xf32>
    %99 = vector.shape_cast %98 : vector<1x1x128xf32> to vector<1x128xf32>
    %100 = vector.broadcast %99 : vector<1x128xf32> to vector<32x128xf32>
    %101 = arith.addf %97, %100 : vector<32x128xf32>
    %cst_55 = arith.constant 0.000000e+00 : f32
    %102 = vector.broadcast %cst_55 : f32 to vector<32x128xf32>
    %103 = arith.cmpf ogt, %101, %102 : vector<32x128xf32>
    %cst_56 = arith.constant 0.00999999977 : f32
    %104 = vector.broadcast %cst_56 : f32 to vector<32x128xf32>
    %105 = arith.mulf %104, %101 : vector<32x128xf32>
    %106 = arith.select %103, %101, %105 : vector<32x128xi1>, vector<32x128xf32>
    %c2_57 = arith.constant 2 : index
    %c0_58 = arith.constant 0 : index
    %c0_59 = arith.constant 0 : index
    %107 = vector.load %arg5[%c2_57, %c0_58, %c0_59] : memref<4x128x256xf32, #tpu.memory_space<vmem>>, vector<1x128x256xf32>
    %108 = vector.shape_cast %107 : vector<1x128x256xf32> to vector<128x256xf32>
    %cst_60 = arith.constant dense<0.000000e+00> : vector<32x256xf32>
    %109 = tpu.matmul %106, %108, %cst_60 {dimension_numbers = #tpu.dot_dimension_numbers<[1], [0], [0], [1], [0, 0, 1, 1], [], []>} : vector<32x128xf32>, vector<128x256xf32>, vector<32x256xf32> -> vector<32x256xf32>
    %110 = vector.extract_strided_slice %109 {offsets = [0, 0], sizes = [32, 128], strides = [1, 1]} : vector<32x256xf32> to vector<32x128xf32>
    %c4_i32_61 = arith.constant 4 : i32
    %111 = tpu.dynamic_rotate %110 by %c4_i32_61 dim 0 : vector<32x128xf32>, i32 -> vector<32x128xf32>
    %cst_62 = arith.constant 0.000000e+00 : f32
    %112 = vector.broadcast %cst_62 : f32 to vector<32x128xf32>
    %113 = arith.select %88, %111, %112 : vector<32x128xi1>, vector<32x128xf32>
    %114 = vector.extract_strided_slice %109 {offsets = [0, 128], sizes = [32, 128], strides = [1, 1]} : vector<32x256xf32> to vector<32x128xf32>
    %115 = arith.addf %113, %114 : vector<32x128xf32>
    %c2_63 = arith.constant 2 : index
    %c0_64 = arith.constant 0 : index
    %c0_65 = arith.constant 0 : index
    %116 = vector.load %arg6[%c2_63, %c0_64, %c0_65] : memref<4x1x128xf32, #tpu.memory_space<vmem>>, vector<1x1x128xf32>
    %117 = vector.shape_cast %116 : vector<1x1x128xf32> to vector<1x128xf32>
    %118 = vector.broadcast %117 : vector<1x128xf32> to vector<32x128xf32>
    %119 = arith.addf %115, %118 : vector<32x128xf32>
    %cst_66 = arith.constant 0.000000e+00 : f32
    %120 = vector.broadcast %cst_66 : f32 to vector<32x128xf32>
    %121 = arith.cmpf ogt, %119, %120 : vector<32x128xf32>
    %cst_67 = arith.constant 0.00999999977 : f32
    %122 = vector.broadcast %cst_67 : f32 to vector<32x128xf32>
    %123 = arith.mulf %122, %119 : vector<32x128xf32>
    %124 = arith.select %121, %119, %123 : vector<32x128xi1>, vector<32x128xf32>
    %125 = arith.addf %124, %86 : vector<32x128xf32>
    %c8_i32 = arith.constant 8 : i32
    %126 = vector.broadcast %c8_i32 : i32 to vector<32x128xi32>
    %127 = arith.cmpi sge, %1, %126 : vector<32x128xi32>
    %c3 = arith.constant 3 : index
    %c0_68 = arith.constant 0 : index
    %c0_69 = arith.constant 0 : index
    %128 = vector.load %arg3[%c3, %c0_68, %c0_69] : memref<4x128x384xf32, #tpu.memory_space<vmem>>, vector<1x128x256xf32>
    %129 = vector.shape_cast %128 : vector<1x128x256xf32> to vector<128x256xf32>
    %cst_70 = arith.constant dense<0.000000e+00> : vector<32x256xf32>
    %130 = tpu.matmul %125, %129, %cst_70 {dimension_numbers = #tpu.dot_dimension_numbers<[1], [0], [0], [1], [0, 0, 1, 1], [], []>} : vector<32x128xf32>, vector<128x256xf32>, vector<32x256xf32> -> vector<32x256xf32>
    %131 = vector.extract_strided_slice %130 {offsets = [0, 0], sizes = [32, 128], strides = [1, 1]} : vector<32x256xf32> to vector<32x128xf32>
    %c8_i32_71 = arith.constant 8 : i32
    %132 = tpu.dynamic_rotate %131 by %c8_i32_71 dim 0 : vector<32x128xf32>, i32 -> vector<32x128xf32>
    %cst_72 = arith.constant 0.000000e+00 : f32
    %133 = vector.broadcast %cst_72 : f32 to vector<32x128xf32>
    %134 = arith.select %127, %132, %133 : vector<32x128xi1>, vector<32x128xf32>
    %135 = vector.extract_strided_slice %130 {offsets = [0, 128], sizes = [32, 128], strides = [1, 1]} : vector<32x256xf32> to vector<32x128xf32>
    %136 = arith.addf %134, %135 : vector<32x128xf32>
    %c3_73 = arith.constant 3 : index
    %c0_74 = arith.constant 0 : index
    %c0_75 = arith.constant 0 : index
    %137 = vector.load %arg4[%c3_73, %c0_74, %c0_75] : memref<4x1x128xf32, #tpu.memory_space<vmem>>, vector<1x1x128xf32>
    %138 = vector.shape_cast %137 : vector<1x1x128xf32> to vector<1x128xf32>
    %139 = vector.broadcast %138 : vector<1x128xf32> to vector<32x128xf32>
    %140 = arith.addf %136, %139 : vector<32x128xf32>
    %cst_76 = arith.constant 0.000000e+00 : f32
    %141 = vector.broadcast %cst_76 : f32 to vector<32x128xf32>
    %142 = arith.cmpf ogt, %140, %141 : vector<32x128xf32>
    %cst_77 = arith.constant 0.00999999977 : f32
    %143 = vector.broadcast %cst_77 : f32 to vector<32x128xf32>
    %144 = arith.mulf %143, %140 : vector<32x128xf32>
    %145 = arith.select %142, %140, %144 : vector<32x128xi1>, vector<32x128xf32>
    %c3_78 = arith.constant 3 : index
    %c0_79 = arith.constant 0 : index
    %c0_80 = arith.constant 0 : index
    %146 = vector.load %arg5[%c3_78, %c0_79, %c0_80] : memref<4x128x256xf32, #tpu.memory_space<vmem>>, vector<1x128x256xf32>
    %147 = vector.shape_cast %146 : vector<1x128x256xf32> to vector<128x256xf32>
    %cst_81 = arith.constant dense<0.000000e+00> : vector<32x256xf32>
    %148 = tpu.matmul %145, %147, %cst_81 {dimension_numbers = #tpu.dot_dimension_numbers<[1], [0], [0], [1], [0, 0, 1, 1], [], []>} : vector<32x128xf32>, vector<128x256xf32>, vector<32x256xf32> -> vector<32x256xf32>
    %149 = vector.extract_strided_slice %148 {offsets = [0, 0], sizes = [32, 128], strides = [1, 1]} : vector<32x256xf32> to vector<32x128xf32>
    %c8_i32_82 = arith.constant 8 : i32
    %150 = tpu.dynamic_rotate %149 by %c8_i32_82 dim 0 : vector<32x128xf32>, i32 -> vector<32x128xf32>
    %cst_83 = arith.constant 0.000000e+00 : f32
    %151 = vector.broadcast %cst_83 : f32 to vector<32x128xf32>
    %152 = arith.select %127, %150, %151 : vector<32x128xi1>, vector<32x128xf32>
    %153 = vector.extract_strided_slice %148 {offsets = [0, 128], sizes = [32, 128], strides = [1, 1]} : vector<32x256xf32> to vector<32x128xf32>
    %154 = arith.addf %152, %153 : vector<32x128xf32>
    %c3_84 = arith.constant 3 : index
    %c0_85 = arith.constant 0 : index
    %c0_86 = arith.constant 0 : index
    %155 = vector.load %arg6[%c3_84, %c0_85, %c0_86] : memref<4x1x128xf32, #tpu.memory_space<vmem>>, vector<1x1x128xf32>
    %156 = vector.shape_cast %155 : vector<1x1x128xf32> to vector<1x128xf32>
    %157 = vector.broadcast %156 : vector<1x128xf32> to vector<32x128xf32>
    %158 = arith.addf %154, %157 : vector<32x128xf32>
    %cst_87 = arith.constant 0.000000e+00 : f32
    %159 = vector.broadcast %cst_87 : f32 to vector<32x128xf32>
    %160 = arith.cmpf ogt, %158, %159 : vector<32x128xf32>
    %cst_88 = arith.constant 0.00999999977 : f32
    %161 = vector.broadcast %cst_88 : f32 to vector<32x128xf32>
    %162 = arith.mulf %161, %158 : vector<32x128xf32>
    %163 = arith.select %160, %158, %162 : vector<32x128xi1>, vector<32x128xf32>
    %164 = arith.addf %163, %125 : vector<32x128xf32>
    %165 = vector.shape_cast %164 : vector<32x128xf32> to vector<2x16x128xf32>
    %166 = tpu.iota {dimensions = array<i32: 0>} : vector<16x128xi32>
    %c2_i32_89 = arith.constant 2 : i32
    %167 = arith.muli %arg0, %c2_i32_89 : i32
    %c0_i32 = arith.constant 0 : i32
    %168 = arith.addi %167, %c0_i32 : i32
    %169 = arith.index_cast %168 : i32 to index
    %170 = memref.load %arg1[%169] : memref<2xi32, #tpu.memory_space<smem>>
    %c1_i32_90 = arith.constant 1 : i32
    %171 = arith.subi %170, %c1_i32_90 : i32
    %c0_i32_91 = arith.constant 0 : i32
    %c15_i32 = arith.constant 15 : i32
    %172 = arith.maxsi %c0_i32_91, %171 : i32
    %173 = arith.minsi %c15_i32, %172 : i32
    %174 = vector.broadcast %173 : i32 to vector<16x128xi32>
    %175 = arith.cmpi eq, %166, %174 : vector<16x128xi32>
    %176 = vector.extract_strided_slice %165 {offsets = [0, 0, 0], sizes = [1, 16, 128], strides = [1, 1, 1]} : vector<2x16x128xf32> to vector<1x16x128xf32>
    %177 = vector.shape_cast %176 : vector<1x16x128xf32> to vector<16x128xf32>
    %cst_92 = arith.constant 0.000000e+00 : f32
    %178 = vector.broadcast %cst_92 : f32 to vector<16x128xf32>
    %179 = arith.select %175, %177, %178 : vector<16x128xi1>, vector<16x128xf32>
    %cst_93 = arith.constant dense<0.000000e+00> : vector<128xf32>
    %180 = vector.multi_reduction <add>, %179, %cst_93 [0] : vector<16x128xf32> to vector<128xf32>
    %181 = vector.shape_cast %180 : vector<128xf32> to vector<1x128xf32>
    %c2_i32_94 = arith.constant 2 : i32
    %182 = arith.muli %arg0, %c2_i32_94 : i32
    %c1_i32_95 = arith.constant 1 : i32
    %183 = arith.addi %182, %c1_i32_95 : i32
    %184 = arith.index_cast %183 : i32 to index
    %185 = memref.load %arg1[%184] : memref<2xi32, #tpu.memory_space<smem>>
    %c1_i32_96 = arith.constant 1 : i32
    %186 = arith.subi %185, %c1_i32_96 : i32
    %c0_i32_97 = arith.constant 0 : i32
    %c15_i32_98 = arith.constant 15 : i32
    %187 = arith.maxsi %c0_i32_97, %186 : i32
    %188 = arith.minsi %c15_i32_98, %187 : i32
    %189 = vector.broadcast %188 : i32 to vector<16x128xi32>
    %190 = arith.cmpi eq, %166, %189 : vector<16x128xi32>
    %191 = vector.extract_strided_slice %165 {offsets = [1, 0, 0], sizes = [1, 16, 128], strides = [1, 1, 1]} : vector<2x16x128xf32> to vector<1x16x128xf32>
    %192 = vector.shape_cast %191 : vector<1x16x128xf32> to vector<16x128xf32>
    %cst_99 = arith.constant 0.000000e+00 : f32
    %193 = vector.broadcast %cst_99 : f32 to vector<16x128xf32>
    %194 = arith.select %190, %192, %193 : vector<16x128xi1>, vector<16x128xf32>
    %cst_100 = arith.constant dense<0.000000e+00> : vector<128xf32>
    %195 = vector.multi_reduction <add>, %194, %cst_100 [0] : vector<16x128xf32> to vector<128xf32>
    %196 = vector.shape_cast %195 : vector<128xf32> to vector<1x128xf32>
    %197 = tpu.concatenate %181, %196 in 0 : vector<1x128xf32>, vector<1x128xf32> -> vector<2x128xf32>
    %c0_101 = arith.constant 0 : index
    %c0_102 = arith.constant 0 : index
    %198 = vector.load %arg8[%c0_101, %c0_102] : memref<2x128xf32, #tpu.memory_space<vmem>>, vector<2x128xf32>
    tpu.vector_store %arg8[%c0_101, %c0_102], %197 {strides = array<i32>} : memref<2x128xf32, #tpu.memory_space<vmem>>, vector<2x128xf32>,
    return
  }
  func.func @transform_0(%arg0: i32, %arg1: memref<2xi32, #tpu.memory_space<smem>>) -> (i32, i32, i32) {
    %c0_i32 = arith.constant 0 : i32
    %c0_i32_0 = arith.constant 0 : i32
    %c0_i32_1 = arith.constant 0 : i32
    return %arg0, %c0_i32, %c0_i32_0 : i32, i32, i32
  }
  func.func @transform_1(%arg0: i32, %arg1: memref<2xi32, #tpu.memory_space<smem>>) -> (i32, i32, i32) {
    %c0_i32 = arith.constant 0 : i32
    %c0_i32_0 = arith.constant 0 : i32
    %c0_i32_1 = arith.constant 0 : i32
    %c0_i32_2 = arith.constant 0 : i32
    return %c0_i32, %c0_i32_0, %c0_i32_1 : i32, i32, i32
  }
  func.func @transform_2(%arg0: i32, %arg1: memref<2xi32, #tpu.memory_space<smem>>) -> (i32, i32, i32) {
    %c0_i32 = arith.constant 0 : i32
    %c0_i32_0 = arith.constant 0 : i32
    %c0_i32_1 = arith.constant 0 : i32
    %c0_i32_2 = arith.constant 0 : i32
    return %c0_i32, %c0_i32_0, %c0_i32_1 : i32, i32, i32
  }
  func.func @transform_3(%arg0: i32, %arg1: memref<2xi32, #tpu.memory_space<smem>>) -> (i32, i32, i32) {
    %c0_i32 = arith.constant 0 : i32
    %c0_i32_0 = arith.constant 0 : i32
    %c0_i32_1 = arith.constant 0 : i32
    %c0_i32_2 = arith.constant 0 : i32
    return %c0_i32, %c0_i32_0, %c0_i32_1 : i32, i32, i32
  }
  func.func @transform_4(%arg0: i32, %arg1: memref<2xi32, #tpu.memory_space<smem>>) -> (i32, i32, i32) {
    %c0_i32 = arith.constant 0 : i32
    %c0_i32_0 = arith.constant 0 : i32
    %c0_i32_1 = arith.constant 0 : i32
    %c0_i32_2 = arith.constant 0 : i32
    return %c0_i32, %c0_i32_0, %c0_i32_1 : i32, i32, i32
  }
  func.func @transform_5(%arg0: i32, %arg1: memref<2xi32, #tpu.memory_space<smem>>) -> (i32, i32, i32) {
    %c0_i32 = arith.constant 0 : i32
    %c0_i32_0 = arith.constant 0 : i32
    %c0_i32_1 = arith.constant 0 : i32
    %c0_i32_2 = arith.constant 0 : i32
    return %c0_i32, %c0_i32_0, %c0_i32_1 : i32, i32, i32
  }
  func.func @transform_6(%arg0: i32, %arg1: memref<2xi32, #tpu.memory_space<smem>>) -> (i32, i32) {
    %c0_i32 = arith.constant 0 : i32
    %c0_i32_0 = arith.constant 0 : i32
    return %arg0, %c0_i32 : i32, i32
  }
}

</mosaic_0001>

<llo_original>
// kernel: tpu_custom_call.1
$region0: #{tpu_custom_call.1}
  #allocation0 [shape = 'u32[]', space=smem, size = 0x4, offset = 0x4, fixed_abs, tag = 'smem constant byte address 0x4 - core index']
  #allocation1 [shape = 'u32[144,128]{1,0:T(1,128)}', space=vmem, size = 0x12000, scoped, tag = 'internal scratch']
  #allocation2 [shape = 's32[1]{0}', space=sflag, size = 0x4, scoped, tag = 'scoped memory for tpu_custom_call.1']
  #allocation3 [shape = 'u8[512]{0}', space=smem, size = 0x200, scoped, tag = 'prefetched SMEM operand 0']
  %s0 = inlined_call_operand.hbm [shape: s32[2], index: 0, kind: input, shape index: {}]
  %s1 = inlined_call_operand.hbm [shape: f32[2,16,128], index: 1, kind: input, shape index: {}]
  %s2 = inlined_call_operand.hbm [shape: f32[4,128,384], index: 2, kind: input, shape index: {}]
  %s3 = inlined_call_operand.vmem [shape: f32[4,1,128], index: 3, kind: input, shape index: {}]
  %s4 = inlined_call_operand.hbm [shape: f32[4,128,256], index: 4, kind: input, shape index: {}]
  %s5 = inlined_call_operand.vmem [shape: f32[4,1,128], index: 5, kind: input, shape index: {}]
  %s6 = inlined_call_operand.vmem [shape: f32[4,1,128], index: 6, kind: input, shape index: {}]
  %s7 = inlined_call_operand.hbm [shape: f32[2,128], index: 7, kind: output, shape index: {}]
  %s8 = sld [smem:[#allocation0]]
  $region46: #{tpu_custom_call.1} parent=0
    _
  %s10 = ssub.s32 1, %s8
  %s11 = scalar_select 0, %s10, %s8
  %13 = dma.hbm_to_smem %s0, 16, [#allocation3], [#allocation2]
  %14 = dma.done [#allocation2], 16
  %15 = sfence
  $region1: #{tpu_custom_call.1} parent=0
    #allocation4 [shape = 'u8[16384]{0}', space=vmem, size = 0x4000, scoped, tag = 'input window, operand 1, single buffered']
    #allocation5 [shape = 's32[1]{0}', space=sflag, size = 0x4, scoped, tag = 'scoped memory for tpu_custom_call.1']
    #allocation6 [shape = 's32[1]{0}', space=sflag, size = 0x4, scoped, tag = 'scoped memory for tpu_custom_call.1']
    #allocation7 [shape = 'u8[786432]{0}', space=vmem, size = 0xc0000, scoped, tag = 'input window, operand 2, single buffered']
    #allocation8 [shape = 's32[1]{0}', space=sflag, size = 0x4, scoped, tag = 'scoped memory for tpu_custom_call.1']
    #allocation9 [shape = 'u8[524288]{0}', space=vmem, size = 0x80000, scoped, tag = 'input window, operand 4, single buffered']
    #allocation10 [shape = 'u8[1024]{0}', space=vmem, size = 0x400, scoped, tag = 'output window, operand 0, single buffered']
    %16 = vsyncpa [#allocation5], 0
    %17 = vsyncpa [#allocation8], 0
    %18 = vsyncpa [#allocation6], 0
    // Predicated region
    $region2: #{tpu_custom_call.1} parent=1 // pred_check
      _
    $region3: #{tpu_custom_call.1} parent=1 // pred_check_branch
      %20 = sbr.rel (0) target = $region5
    $region4: #{tpu_custom_call.1} parent=1 // pred_region
      %s22 = ssub.s32 512, 512
      %23 = vsyncadd [#allocation5], %s22
      %s24 = sshll.u32 [#allocation4], 4
      %s25 = int_to_ptr.vmem [resolvable:$true] %s24
      %30 = dma.hbm_to_vmem [thread:$0]  %s1, 512, %s25, [#allocation5], 128, 128, 8
    $region5: #{tpu_custom_call.1} parent=1 // pred_fallthru
      _
    // Predicated region
    $region6: #{tpu_custom_call.1} parent=1 // pred_check
      _
    $region7: #{tpu_custom_call.1} parent=1 // pred_check_branch
      %32 = sbr.rel (0) target = $region9
    $region8: #{tpu_custom_call.1} parent=1 // pred_region
      %s34 = ssub.s32 24576, 24576
      %35 = vsyncadd [#allocation8], %s34
      %s36 = sshll.u32 [#allocation7], 4
      %s37 = int_to_ptr.vmem [resolvable:$true] %s36
      %42 = dma.hbm_to_vmem [thread:$0]  %s2, 24576, %s37, [#allocation8], 384, 384, 24
    $region9: #{tpu_custom_call.1} parent=1 // pred_fallthru
      _
    // Predicated region
    $region10: #{tpu_custom_call.1} parent=1 // pred_check
      _
    $region11: #{tpu_custom_call.1} parent=1 // pred_check_branch
      %44 = sbr.rel (0) target = $region13
    $region12: #{tpu_custom_call.1} parent=1 // pred_region
      _
    $region13: #{tpu_custom_call.1} parent=1 // pred_fallthru
      _
    // Predicated region
    $region14: #{tpu_custom_call.1} parent=1 // pred_check
      _
    $region15: #{tpu_custom_call.1} parent=1 // pred_check_branch
      %46 = sbr.rel (0) target = $region17
    $region16: #{tpu_custom_call.1} parent=1 // pred_region
      %s48 = ssub.s32 16384, 16384
      %49 = vsyncadd [#allocation8], %s48
      %s50 = sshll.u32 [#allocation9], 4
      %s51 = int_to_ptr.vmem [resolvable:$true] %s50
      %56 = dma.hbm_to_vmem [thread:$0]  %s4, 16384, %s51, [#allocation8], 256, 256, 16
    $region17: #{tpu_custom_call.1} parent=1 // pred_fallthru
      _
    // Predicated region
    $region18: #{tpu_custom_call.1} parent=1 // pred_check
      _
    $region19: #{tpu_custom_call.1} parent=1 // pred_check_branch
      %58 = sbr.rel (0) target = $region21
    $region20: #{tpu_custom_call.1} parent=1 // pred_region
      _
    $region21: #{tpu_custom_call.1} parent=1 // pred_fallthru
      _
    // Predicated region
    $region22: #{tpu_custom_call.1} parent=1 // pred_check
      _
    $region23: #{tpu_custom_call.1} parent=1 // pred_check_branch
      %60 = sbr.rel (0) target = $region25
    $region24: #{tpu_custom_call.1} parent=1 // pred_region
      _
    $region25: #{tpu_custom_call.1} parent=1 // pred_fallthru
      _
    // Predicated region
    $region26: #{tpu_custom_call.1} parent=1 // pred_check
      _
    $region27: #{tpu_custom_call.1} parent=1 // pred_check_branch
      %62 = sbr.rel (0) target = $region29
    $region28: #{tpu_custom_call.1} parent=1 // pred_region
      %63 = dma.done [#allocation5], 512
    $region29: #{tpu_custom_call.1} parent=1 // pred_fallthru
      _
    // Predicated region
    $region30: #{tpu_custom_call.1} parent=1 // pred_check
      _
    $region31: #{tpu_custom_call.1} parent=1 // pred_check_branch
      %65 = sbr.rel (0) target = $region33
    $region32: #{tpu_custom_call.1} parent=1 // pred_region
      %66 = dma.done [#allocation8], 24576
    $region33: #{tpu_custom_call.1} parent=1 // pred_fallthru
      _
    // Predicated region
    $region34: #{tpu_custom_call.1} parent=1 // pred_check
      _
    $region35: #{tpu_custom_call.1} parent=1 // pred_check_branch
      %68 = sbr.rel (0) target = $region37
    $region36: #{tpu_custom_call.1} parent=1 // pred_region
      %69 = dma.done [#allocation8], 16384
    $region37: #{tpu_custom_call.1} parent=1 // pred_fallthru
      _
    %v70 = vlaneseq
    %v71 = vshrl.u32 %v70, 7
    %v72 = vadd.s32 %v71, 8
    %v73 = vld [vmem:[#allocation4] sm:$0xff]
    %v74 = vld [vmem:[#allocation4 + $0x8] sm:$0xff]
    %v75 = vld [vmem:[#allocation4 + $0x10] sm:$0xff]
    %v76 = vld [vmem:[#allocation4 + $0x18] sm:$0xff]
    %vm77 = vcmp.ge.s32.totalorder %v71, 1
    %vm78 = vcmp.ge.s32.totalorder %v72, 1
    %v79 = vld [vmem:[#allocation7] sm:$0xff]
    %v80 = vld [vmem:[#allocation7 + $0x8] sm:$0xff]
    %v81 = vld [vmem:[#allocation7 + $0x10] sm:$0xff]
    %v82 = vld [vmem:[#allocation7 + $0x18] sm:$0xff]
    %v83 = vld [vmem:[#allocation7 + $0x20] sm:$0xff]
    %v84 = vld [vmem:[#allocation7 + $0x28] sm:$0xff]
    %v85 = vld [vmem:[#allocation7 + $0x30] sm:$0xff]
    %v86 = vld [vmem:[#allocation7 + $0x38] sm:$0xff]
    %v87 = vld [vmem:[#allocation7 + $0x40] sm:$0xff]
    %v88 = vld [vmem:[#allocation7 + $0x48] sm:$0xff]
    %v89 = vld [vmem:[#allocation7 + $0x50] sm:$0xff]
    %v90 = vld [vmem:[#allocation7 + $0x58] sm:$0xff]
    %v91 = vld [vmem:[#allocation7 + $0x60] sm:$0xff]
    %v92 = vld [vmem:[#allocation7 + $0x68] sm:$0xff]
    %v93 = vld [vmem:[#allocation7 + $0x70] sm:$0xff]
    %v94 = vld [vmem:[#allocation7 + $0x78] sm:$0xff]
    %v95 = vld [vmem:[#allocation7 + $0x80] sm:$0xff]
    %v96 = vld [vmem:[#allocation7 + $0x88] sm:$0xff]
    %v97 = vld [vmem:[#allocation7 + $0x90] sm:$0xff]
    %v98 = vld [vmem:[#allocation7 + $0x98] sm:$0xff]
    %v99 = vld [vmem:[#allocation7 + $0xa0] sm:$0xff]
    %v100 = vld [vmem:[#allocation7 + $0xa8] sm:$0xff]
    %v101 = vld [vmem:[#allocation7 + $0xb0] sm:$0xff]
    %v102 = vld [vmem:[#allocation7 + $0xb8] sm:$0xff]
    %v103 = vld [vmem:[#allocation7 + $0xc0] sm:$0xff]
    %v104 = vld [vmem:[#allocation7 + $0xc8] sm:$0xff]
    %v105 = vld [vmem:[#allocation7 + $0xd0] sm:$0xff]
    %v106 = vld [vmem:[#allocation7 + $0xd8] sm:$0xff]
    %v107 = vld [vmem:[#allocation7 + $0xe0] sm:$0xff]
    %v108 = vld [vmem:[#allocation7 + $0xe8] sm:$0xff]
    %v109 = vld [vmem:[#allocation7 + $0xf0] sm:$0xff]
    %v110 = vld [vmem:[#allocation7 + $0xf8] sm:$0xff]
    %v111 = vld [vmem:[#allocation7 + $0x100] sm:$0xff]
    %v112 = vld [vmem:[#allocation7 + $0x108] sm:$0xff]
    %v113 = vld [vmem:[#allocation7 + $0x110] sm:$0xff]
    %v114 = vld [vmem:[#allocation7 + $0x118] sm:$0xff]
    %v115 = vld [vmem:[#allocation7 + $0x120] sm:$0xff]
    %v116 = vld [vmem:[#allocation7 + $0x128] sm:$0xff]
    %v117 = vld [vmem:[#allocation7 + $0x130] sm:$0xff]
    %v118 = vld [vmem:[#allocation7 + $0x138] sm:$0xff]
    %v119 = vld [vmem:[#allocation7 + $0x140] sm:$0xff]
    %v120 = vld [vmem:[#allocation7 + $0x148] sm:$0xff]
    %v121 = vld [vmem:[#allocation7 + $0x150] sm:$0xff]
    %v122 = vld [vmem:[#allocation7 + $0x158] sm:$0xff]
    %v123 = vld [vmem:[#allocation7 + $0x160] sm:$0xff]
    %v124 = vld [vmem:[#allocation7 + $0x168] sm:$0xff]
    %v125 = vld [vmem:[#allocation7 + $0x170] sm:$0xff]
    %v126 = vld [vmem:[#allocation7 + $0x178] sm:$0xff]
    %127 = vmatprep.subr.mxu0 %v80
    %128 = vmatpush1.msra.mxu0 %v79
    %129 = vmatprep.subr.mxu0 %v83
    %130 = vmatpush1.msra.mxu0 %v82
    %131 = vmatprep.subr.mxu0 %v86
    %132 = vmatpush1.msra.mxu0 %v85
    %133 = vmatprep.subr.mxu0 %v89
    %134 = vmatpush1.msra.mxu0 %v88
    %135 = vmatprep.subr.mxu0 %v92
    %136 = vmatpush1.msra.mxu0 %v91
    %137 = vmatprep.subr.mxu0 %v95
    %138 = vmatpush1.msra.mxu0 %v94
    %139 = vmatprep.subr.mxu0 %v98
    %140 = vmatpush1.msra.mxu0 %v97
    %141 = vmatprep.subr.mxu0 %v101
    %142 = vmatpush1.msra.mxu0 %v100
    %143 = vmatprep.subr.mxu0 %v104
    %144 = vmatpush1.msra.mxu0 %v103
    %145 = vmatprep.subr.mxu0 %v107
    %146 = vmatpush1.msra.mxu0 %v106
    %147 = vmatprep.subr.mxu0 %v110
    %148 = vmatpush1.msra.mxu0 %v109
    %149 = vmatprep.subr.mxu0 %v113
    %150 = vmatpush1.msra.mxu0 %v112
    %151 = vmatprep.subr.mxu0 %v116
    %152 = vmatpush1.msra.mxu0 %v115
    %153 = vmatprep.subr.mxu0 %v119
    %154 = vmatpush1.msra.mxu0 %v118
    %155 = vmatprep.subr.mxu0 %v122
    %156 = vmatpush1.msra.mxu0 %v121
    %157 = vmatprep.subr.mxu0 %v125
    %158 = vmatpush1.msra.mxu0 %v124
    %159 = vmatprep.subr.mxu0 0.0
    %160 = vmatpush1.msra.mxu0 0.0
    %161 = vmatprep.subr.mxu0 0.0
    %162 = vmatpush1.msra.mxu0 0.0
    %163 = vmatprep.subr.mxu0 0.0
    %164 = vmatpush1.msra.mxu0 0.0
    %165 = vmatprep.subr.mxu0 0.0
    %166 = vmatpush1.msra.mxu0 0.0
    %167 = vmatprep.subr.mxu0 0.0
    %168 = vmatpush1.msra.mxu0 0.0
    %169 = vmatprep.subr.mxu0 0.0
    %170 = vmatpush1.msra.mxu0 0.0
    %171 = vmatprep.subr.mxu0 0.0
    %172 = vmatpush1.msra.mxu0 0.0
    %173 = vmatprep.subr.mxu0 0.0
    %174 = vmatpush1.msra.mxu0 0.0
    %175 = vmatprep.subr.mxu0 0.0
    %176 = vmatpush1.msra.mxu0 0.0
    %177 = vmatprep.subr.mxu0 0.0
    %178 = vmatpush1.msra.mxu0 0.0
    %179 = vmatprep.subr.mxu0 0.0
    %180 = vmatpush1.msra.mxu0 0.0
    %181 = vmatprep.subr.mxu0 0.0
    %182 = vmatpush1.msra.mxu0 0.0
    %183 = vmatprep.subr.mxu0 0.0
    %184 = vmatpush1.msra.mxu0 0.0
    %185 = vmatprep.subr.mxu0 0.0
    %186 = vmatpush1.msra.mxu0 0.0
    %187 = vmatprep.subr.mxu0 0.0
    %188 = vmatpush1.msra.mxu0 0.0
    %189 = vmatprep.subr.mxu0 0.0
    %190 = vmatpush1.msra.mxu0 0.0
    %191 = vmatprep.mubr.f32.mxu0 0.0
    %192 = vmatmul.mubr.f32.gmra.mrb[0].mxu0 %v73
    %v193 = vpop.f32.mrb[0].mxu0
    %v194 = vadd.f32 0.0, %v193
    %v195 = vpop.f32.mrb[0].mxu0
    %v196 = vadd.f32 0.0, %v195
    %197 = vmatprep.mubr.f32.mxu0 0.0
    %198 = vmatmul.mubr.f32.gmra.mrb[0].mxu0 %v74
    %v199 = vpop.f32.mrb[0].mxu0
    %v200 = vadd.f32 0.0, %v199
    %v201 = vpop.f32.mrb[0].mxu0
    %v202 = vadd.f32 0.0, %v201
    %203 = vmatprep.mubr.f32.mxu0 0.0
    %204 = vmatmul.mubr.f32.gmra.mrb[0].mxu0 %v75
    %v205 = vpop.f32.mrb[0].mxu0
    %v206 = vadd.f32 0.0, %v205
    %v207 = vpop.f32.mrb[0].mxu0
    %v208 = vadd.f32 0.0, %v207
    %209 = vmatprep.mubr.f32.mxu0 0.0
    %210 = vmatmul.mubr.f32.gmra.mrb[0].mxu0 %v76
    %v211 = vpop.f32.mrb[0].mxu0
    %v212 = vadd.f32 0.0, %v211
    %v213 = vpop.f32.mrb[0].mxu0
    %v214 = vadd.f32 0.0, %v213
    %215 = vdwg.mxu0
    %216 = vmatprep.subr.mxu0 0.0
    %217 = vmatpush1.msra.mxu0 %v81
    %218 = vmatprep.subr.mxu0 0.0
    %219 = vmatpush1.msra.mxu0 %v84
    %220 = vmatprep.subr.mxu0 0.0
    %221 = vmatpush1.msra.mxu0 %v87
    %222 = vmatprep.subr.mxu0 0.0
    %223 = vmatpush1.msra.mxu0 %v90
    %224 = vmatprep.subr.mxu0 0.0
    %225 = vmatpush1.msra.mxu0 %v93
    %226 = vmatprep.subr.mxu0 0.0
    %227 = vmatpush1.msra.mxu0 %v96
    %228 = vmatprep.subr.mxu0 0.0
    %229 = vmatpush1.msra.mxu0 %v99
    %230 = vmatprep.subr.mxu0 0.0
    %231 = vmatpush1.msra.mxu0 %v102
    %232 = vmatprep.subr.mxu0 0.0
    %233 = vmatpush1.msra.mxu0 %v105
    %234 = vmatprep.subr.mxu0 0.0
    %235 = vmatpush1.msra.mxu0 %v108
    %236 = vmatprep.subr.mxu0 0.0
    %237 = vmatpush1.msra.mxu0 %v111
    %238 = vmatprep.subr.mxu0 0.0
    %239 = vmatpush1.msra.mxu0 %v114
    %240 = vmatprep.subr.mxu0 0.0
    %241 = vmatpush1.msra.mxu0 %v117
    %242 = vmatprep.subr.mxu0 0.0
    %243 = vmatpush1.msra.mxu0 %v120
    %244 = vmatprep.subr.mxu0 0.0
    %245 = vmatpush1.msra.mxu0 %v123
    %246 = vmatprep.subr.mxu0 0.0
    %247 = vmatpush1.msra.mxu0 %v126
    %248 = vmatprep.subr.mxu0 0.0
    %249 = vmatpush1.msra.mxu0 0.0
    %250 = vmatprep.subr.mxu0 0.0
    %251 = vmatpush1.msra.mxu0 0.0
    %252 = vmatprep.subr.mxu0 0.0
    %253 = vmatpush1.msra.mxu0 0.0
    %254 = vmatprep.subr.mxu0 0.0
    %255 = vmatpush1.msra.mxu0 0.0
    %256 = vmatprep.subr.mxu0 0.0
    %257 = vmatpush1.msra.mxu0 0.0
    %258 = vmatprep.subr.mxu0 0.0
    %259 = vmatpush1.msra.mxu0 0.0
    %260 = vmatprep.subr.mxu0 0.0
    %261 = vmatpush1.msra.mxu0 0.0
    %262 = vmatprep.subr.mxu0 0.0
    %263 = vmatpush1.msra.mxu0 0.0
    %264 = vmatprep.subr.mxu0 0.0
    %265 = vmatpush1.msra.mxu0 0.0
    %266 = vmatprep.subr.mxu0 0.0
    %267 = vmatpush1.msra.mxu0 0.0
    %268 = vmatprep.subr.mxu0 0.0
    %269 = vmatpush1.msra.mxu0 0.0
    %270 = vmatprep.subr.mxu0 0.0
    %271 = vmatpush1.msra.mxu0 0.0
    %272 = vmatprep.subr.mxu0 0.0
    %273 = vmatpush1.msra.mxu0 0.0
    %274 = vmatprep.subr.mxu0 0.0
    %275 = vmatpush1.msra.mxu0 0.0
    %276 = vmatprep.subr.mxu0 0.0
    %277 = vmatpush1.msra.mxu0 0.0
    %278 = vmatprep.subr.mxu0 0.0
    %279 = vmatpush1.msra.mxu0 0.0
    %280 = vmatprep.mubr.f32.mxu0 0.0
    %281 = vmatmul.mubr.f32.gmra.mrb[0].mxu0 %v73
    %v282 = vpop.f32.mrb[0].mxu0
    %v283 = vadd.f32 0.0, %v282
    %v284 = vpop.f32.mrb[0].mxu0
    %285 = vmatprep.mubr.f32.mxu0 0.0
    %286 = vmatmul.mubr.f32.gmra.mrb[0].mxu0 %v74
    %v287 = vpop.f32.mrb[0].mxu0
    %v288 = vadd.f32 0.0, %v287
    %v289 = vpop.f32.mrb[0].mxu0
    %290 = vmatprep.mubr.f32.mxu0 0.0
    %291 = vmatmul.mubr.f32.gmra.mrb[0].mxu0 %v75
    %v292 = vpop.f32.mrb[0].mxu0
    %v293 = vadd.f32 0.0, %v292
    %v294 = vpop.f32.mrb[0].mxu0
    %295 = vmatprep.mubr.f32.mxu0 0.0
    %296 = vmatmul.mubr.f32.gmra.mrb[0].mxu0 %v76
    %v297 = vpop.f32.mrb[0].mxu0
    %v298 = vadd.f32 0.0, %v297
    %v299 = vpop.f32.mrb[0].mxu0
    %300 = vdwg.mxu0
    %v301 = vrot.slane %v194, 7
    %v302 = vrot.slane %v200, 7
    %v303 = vrot.slane %v206, 7
    %v304 = vrot.slane %v212, 7
    %vm305 = vcmp.lt.s32.totalorder %v71, 1
    %v306 = vsel %vm305, %v303, %v304
    %v307 = vsel %vm305, %v302, %v303
    %v308 = vsel %vm305, %v301, %v302
    %v309 = vsel %vm305, %v304, %v301
    %v310 = vsel %vm77, %v309, 0.0
    %v311 = vsel %vm78, %v308, 0.0
    %v312 = vsel %vm77, %v307, 0.0
    %v313 = vsel %vm78, %v306, 0.0
    %v314 = vadd.f32 %v310, %v196
    %v315 = vadd.f32 %v311, %v202
    %v316 = vadd.f32 %v312, %v208
    %v317 = vadd.f32 %v313, %v214
    %v318 = vld [vmem:[%s3] sm:$0x1]
    %v320 = vlaneseq
    %v321 = vshrl.u32 %v320, 7
    %v322 = vsub.s32 0, %v321
    %v323 = vrot.slane %v318, %v322
    %v325 = vadd.f32 %v314, %v323
    %v326 = vadd.f32 %v315, %v323
    %v327 = vadd.f32 %v316, %v323
    %v328 = vadd.f32 %v317, %v323
    %vm329 = vcmp.gt.f32.partialorder %v325, 0.0
    %vm330 = vcmp.gt.f32.partialorder %v326, 0.0
    %vm331 = vcmp.gt.f32.partialorder %v327, 0.0
    %vm332 = vcmp.gt.f32.partialorder %v328, 0.0
    %v333 = vmul.f32 %v325, 0.01
    %v334 = vmul.f32 %v326, 0.01
    %v335 = vmul.f32 %v327, 0.01
    %v336 = vmul.f32 %v328, 0.01
    %v337 = vsel %vm329, %v325, %v333
    %v338 = vsel %vm330, %v326, %v334
    %v339 = vsel %vm331, %v327, %v335
    %v340 = vsel %vm332, %v328, %v336
    %v341 = vld [vmem:[#allocation9] sm:$0xff]
    %v342 = vld [vmem:[#allocation9 + $0x8] sm:$0xff]
    %v343 = vld [vmem:[#allocation9 + $0x10] sm:$0xff]
    %v344 = vld [vmem:[#allocation9 + $0x18] sm:$0xff]
    %v345 = vld [vmem:[#allocation9 + $0x20] sm:$0xff]
    %v346 = vld [vmem:[#allocation9 + $0x28] sm:$0xff]
    %v347 = vld [vmem:[#allocation9 + $0x30] sm:$0xff]
    %v348 = vld [vmem:[#allocation9 + $0x38] sm:$0xff]
    %v349 = vld [vmem:[#allocation9 + $0x40] sm:$0xff]
    %v350 = vld [vmem:[#allocation9 + $0x48] sm:$0xff]
    %v351 = vld [vmem:[#allocation9 + $0x50] sm:$0xff]
    %v352 = vld [vmem:[#allocation9 + $0x58] sm:$0xff]
    %v353 = vld [vmem:[#allocation9 + $0x60] sm:$0xff]
    %v354 = vld [vmem:[#allocation9 + $0x68] sm:$0xff]
    %v355 = vld [vmem:[#allocation9 + $0x70] sm:$0xff]
    %v356 = vld [vmem:[#allocation9 + $0x78] sm:$0xff]
    %v357 = vld [vmem:[#allocation9 + $0x80] sm:$0xff]
    %v358 = vld [vmem:[#allocation9 + $0x88] sm:$0xff]
    %v359 = vld [vmem:[#allocation9 + $0x90] sm:$0xff]
    %v360 = vld [vmem:[#allocation9 + $0x98] sm:$0xff]
    %v361 = vld [vmem:[#allocation9 + $0xa0] sm:$0xff]
    %v362 = vld [vmem:[#allocation9 + $0xa8] sm:$0xff]
    %v363 = vld [vmem:[#allocation9 + $0xb0] sm:$0xff]
    %v364 = vld [vmem:[#allocation9 + $0xb8] sm:$0xff]
    %v365 = vld [vmem:[#allocation9 + $0xc0] sm:$0xff]
    %v366 = vld [vmem:[#allocation9 + $0xc8] sm:$0xff]
    %v367 = vld [vmem:[#allocation9 + $0xd0] sm:$0xff]
    %v368 = vld [vmem:[#allocation9 + $0xd8] sm:$0xff]
    %v369 = vld [vmem:[#allocation9 + $0xe0] sm:$0xff]
    %v370 = vld [vmem:[#allocation9 + $0xe8] sm:$0xff]
    %v371 = vld [vmem:[#allocation9 + $0xf0] sm:$0xff]
    %v372 = vld [vmem:[#allocation9 + $0xf8] sm:$0xff]
    %373 = vmatprep.subr.mxu0 %v342
    %374 = vmatpush1.msra.mxu0 %v341
    %375 = vmatprep.subr.mxu0 %v344
    %376 = vmatpush1.msra.mxu0 %v343
    %377 = vmatprep.subr.mxu0 %v346
    %378 = vmatpush1.msra.mxu0 %v345
    %379 = vmatprep.subr.mxu0 %v348
    %380 = vmatpush1.msra.mxu0 %v347
    %381 = vmatprep.subr.mxu0 %v350
    %382 = vmatpush1.msra.mxu0 %v349
    %383 = vmatprep.subr.mxu0 %v352
    %384 = vmatpush1.msra.mxu0 %v351
    %385 = vmatprep.subr.mxu0 %v354
    %386 = vmatpush1.msra.mxu0 %v353
    %387 = vmatprep.subr.mxu0 %v356
    %388 = vmatpush1.msra.mxu0 %v355
    %389 = vmatprep.subr.mxu0 %v358
    %390 = vmatpush1.msra.mxu0 %v357
    %391 = vmatprep.subr.mxu0 %v360
    %392 = vmatpush1.msra.mxu0 %v359
    %393 = vmatprep.subr.mxu0 %v362
    %394 = vmatpush1.msra.mxu0 %v361
    %395 = vmatprep.subr.mxu0 %v364
    %396 = vmatpush1.msra.mxu0 %v363
    %397 = vmatprep.subr.mxu0 %v366
    %398 = vmatpush1.msra.mxu0 %v365
    %399 = vmatprep.subr.mxu0 %v368
    %400 = vmatpush1.msra.mxu0 %v367
    %401 = vmatprep.subr.mxu0 %v370
    %402 = vmatpush1.msra.mxu0 %v369
    %403 = vmatprep.subr.mxu0 %v372
    %404 = vmatpush1.msra.mxu0 %v371
    %405 = vmatprep.subr.mxu0 0.0
    %406 = vmatpush1.msra.mxu0 0.0
    %407 = vmatprep.subr.mxu0 0.0
    %408 = vmatpush1.msra.mxu0 0.0
    %409 = vmatprep.subr.mxu0 0.0
    %410 = vmatpush1.msra.mxu0 0.0
    %411 = vmatprep.subr.mxu0 0.0
    %412 = vmatpush1.msra.mxu0 0.0
    %413 = vmatprep.subr.mxu0 0.0
    %414 = vmatpush1.msra.mxu0 0.0
    %415 = vmatprep.subr.mxu0 0.0
    %416 = vmatpush1.msra.mxu0 0.0
    %417 = vmatprep.subr.mxu0 0.0
    %418 = vmatpush1.msra.mxu0 0.0
    %419 = vmatprep.subr.mxu0 0.0
    %420 = vmatpush1.msra.mxu0 0.0
    %421 = vmatprep.subr.mxu0 0.0
    %422 = vmatpush1.msra.mxu0 0.0
    %423 = vmatprep.subr.mxu0 0.0
    %424 = vmatpush1.msra.mxu0 0.0
    %425 = vmatprep.subr.mxu0 0.0
    %426 = vmatpush1.msra.mxu0 0.0
    %427 = vmatprep.subr.mxu0 0.0
    %428 = vmatpush1.msra.mxu0 0.0
    %429 = vmatprep.subr.mxu0 0.0
    %430 = vmatpush1.msra.mxu0 0.0
    %431 = vmatprep.subr.mxu0 0.0
    %432 = vmatpush1.msra.mxu0 0.0
    %433 = vmatprep.subr.mxu0 0.0
    %434 = vmatpush1.msra.mxu0 0.0
    %435 = vmatprep.subr.mxu0 0.0
    %436 = vmatpush1.msra.mxu0 0.0
    %437 = vmatprep.mubr.f32.mxu0 0.0
    %438 = vmatmul.mubr.f32.gmra.mrb[0].mxu0 %v337
    %v439 = vpop.f32.mrb[0].mxu0
    %v440 = vadd.f32 0.0, %v439
    %v441 = vpop.f32.mrb[0].mxu0
    %v442 = vadd.f32 0.0, %v441
    %443 = vmatprep.mubr.f32.mxu0 0.0
    %444 = vmatmul.mubr.f32.gmra.mrb[0].mxu0 %v338
    %v445 = vpop.f32.mrb[0].mxu0
    %v446 = vadd.f32 0.0, %v445
    %v447 = vpop.f32.mrb[0].mxu0
    %v448 = vadd.f32 0.0, %v447
    %449 = vmatprep.mubr.f32.mxu0 0.0
    %450 = vmatmul.mubr.f32.gmra.mrb[0].mxu0 %v339
    %v451 = vpop.f32.mrb[0].mxu0
    %v452 = vadd.f32 0.0, %v451
    %v453 = vpop.f32.mrb[0].mxu0
    %v454 = vadd.f32 0.0, %v453
    %455 = vmatprep.mubr.f32.mxu0 0.0
    %456 = vmatmul.mubr.f32.gmra.mrb[0].mxu0 %v340
    %v457 = vpop.f32.mrb[0].mxu0
    %v458 = vadd.f32 0.0, %v457
    %v459 = vpop.f32.mrb[0].mxu0
    %v460 = vadd.f32 0.0, %v459
    %461 = vdwg.mxu0
    %v462 = vrot.slane %v440, 7
    %v463 = vrot.slane %v446, 7
    %v464 = vrot.slane %v452, 7
    %v465 = vrot.slane %v458, 7
    %v466 = vsel %vm305, %v464, %v465
    %v467 = vsel %vm305, %v463, %v464
    %v468 = vsel %vm305, %v462, %v463
    %v469 = vsel %vm305, %v465, %v462
    %v470 = vsel %vm77, %v469, 0.0
    %v471 = vsel %vm78, %v468, 0.0
    %v472 = vsel %vm77, %v467, 0.0
    %v473 = vsel %vm78, %v466, 0.0
    %v474 = vadd.f32 %v470, %v442
    %v475 = vadd.f32 %v471, %v448
    %v476 = vadd.f32 %v472, %v454
    %v477 = vadd.f32 %v473, %v460
    %v478 = vld [vmem:[%s5] sm:$0x1]
    %v480 = vlaneseq
    %v481 = vshrl.u32 %v480, 7
    %v482 = vsub.s32 0, %v481
    %v483 = vrot.slane %v478, %v482
    %v485 = vadd.f32 %v474, %v483
    %v486 = vadd.f32 %v475, %v483
    %v487 = vadd.f32 %v476, %v483
    %v488 = vadd.f32 %v477, %v483
    %vm489 = vcmp.gt.f32.partialorder %v485, 0.0
    %vm490 = vcmp.gt.f32.partialorder %v486, 0.0
    %vm491 = vcmp.gt.f32.partialorder %v487, 0.0
    %vm492 = vcmp.gt.f32.partialorder %v488, 0.0
    %v493 = vmul.f32 %v485, 0.01
    %v494 = vmul.f32 %v486, 0.01
    %v495 = vmul.f32 %v487, 0.01
    %v496 = vmul.f32 %v488, 0.01
    %v497 = vsel %vm489, %v485, %v493
    %v498 = vsel %vm490, %v486, %v494
    %v499 = vsel %vm491, %v487, %v495
    %v500 = vsel %vm492, %v488, %v496
    %v501 = vld [vmem:[%s6] sm:$0x1]
    %v503 = vlaneseq
    %v504 = vshrl.u32 %v503, 7
    %v505 = vsub.s32 0, %v504
    %v506 = vrot.slane %v501, %v505
    %v508 = vadd.f32 %v283, %v506
    %v509 = vadd.f32 %v288, %v506
    %v510 = vadd.f32 %v293, %v506
    %v511 = vadd.f32 %v298, %v506
    %v512 = vadd.f32 %v497, %v508
    %v513 = vadd.f32 %v498, %v509
    %v514 = vadd.f32 %v499, %v510
    %v515 = vadd.f32 %v500, %v511
    %vm516 = vcmp.ge.s32.totalorder %v71, 2
    %vm517 = vcmp.ge.s32.totalorder %v72, 2
    %s518 = scalar_lea.vmem [#allocation7], 384
    %v519 = vld [vmem:[%s518] sm:$0xff]
    %v520 = vld [vmem:[%s518 + $0x8] sm:$0xff]
    %v521 = vld [vmem:[%s518 + $0x18] sm:$0xff]
    %v522 = vld [vmem:[%s518 + $0x20] sm:$0xff]
    %v523 = vld [vmem:[%s518 + $0x30] sm:$0xff]
    %v524 = vld [vmem:[%s518 + $0x38] sm:$0xff]
    %v525 = vld [vmem:[%s518 + $0x48] sm:$0xff]
    %v526 = vld [vmem:[%s518 + $0x50] sm:$0xff]
    %v527 = vld [vmem:[%s518 + $0x60] sm:$0xff]
    %v528 = vld [vmem:[%s518 + $0x68] sm:$0xff]
    %v529 = vld [vmem:[%s518 + $0x78] sm:$0xff]
    %v530 = vld [vmem:[%s518 + $0x80] sm:$0xff]
    %v531 = vld [vmem:[%s518 + $0x90] sm:$0xff]
    %v532 = vld [vmem:[%s518 + $0x98] sm:$0xff]
    %v533 = vld [vmem:[%s518 + $0xa8] sm:$0xff]
    %v534 = vld [vmem:[%s518 + $0xb0] sm:$0xff]
    %v535 = vld [vmem:[%s518 + $0xc0] sm:$0xff]
    %v536 = vld [vmem:[%s518 + $0xc8] sm:$0xff]
    %v537 = vld [vmem:[%s518 + $0xd8] sm:$0xff]
    %v538 = vld [vmem:[%s518 + $0xe0] sm:$0xff]
    %v539 = vld [vmem:[%s518 + $0xf0] sm:$0xff]
    %v540 = vld [vmem:[%s518 + $0xf8] sm:$0xff]
    %v541 = vld [vmem:[%s518 + $0x108] sm:$0xff]
    %v542 = vld [vmem:[%s518 + $0x110] sm:$0xff]
    %v543 = vld [vmem:[%s518 + $0x120] sm:$0xff]
    %v544 = vld [vmem:[%s518 + $0x128] sm:$0xff]
    %v545 = vld [vmem:[%s518 + $0x138] sm:$0xff]
    %v546 = vld [vmem:[%s518 + $0x140] sm:$0xff]
    %v547 = vld [vmem:[%s518 + $0x150] sm:$0xff]
    %v548 = vld [vmem:[%s518 + $0x158] sm:$0xff]
    %v549 = vld [vmem:[%s518 + $0x168] sm:$0xff]
    %v550 = vld [vmem:[%s518 + $0x170] sm:$0xff]
    %551 = vmatprep.subr.mxu0 %v520
    %552 = vmatpush1.msra.mxu0 %v519
    %553 = vmatprep.subr.mxu0 %v522
    %554 = vmatpush1.msra.mxu0 %v521
    %555 = vmatprep.subr.mxu0 %v524
    %556 = vmatpush1.msra.mxu0 %v523
    %557 = vmatprep.subr.mxu0 %v526
    %558 = vmatpush1.msra.mxu0 %v525
    %559 = vmatprep.subr.mxu0 %v528
    %560 = vmatpush1.msra.mxu0 %v527
    %561 = vmatprep.subr.mxu0 %v530
    %562 = vmatpush1.msra.mxu0 %v529
    %563 = vmatprep.subr.mxu0 %v532
    %564 = vmatpush1.msra.mxu0 %v531
    %565 = vmatprep.subr.mxu0 %v534
    %566 = vmatpush1.msra.mxu0 %v533
    %567 = vmatprep.subr.mxu0 %v536
    %568 = vmatpush1.msra.mxu0 %v535
    %569 = vmatprep.subr.mxu0 %v538
    %570 = vmatpush1.msra.mxu0 %v537
    %571 = vmatprep.subr.mxu0 %v540
    %572 = vmatpush1.msra.mxu0 %v539
    %573 = vmatprep.subr.mxu0 %v542
    %574 = vmatpush1.msra.mxu0 %v541
    %575 = vmatprep.subr.mxu0 %v544
    %576 = vmatpush1.msra.mxu0 %v543
    %577 = vmatprep.subr.mxu0 %v546
    %578 = vmatpush1.msra.mxu0 %v545
    %579 = vmatprep.subr.mxu0 %v548
    %580 = vmatpush1.msra.mxu0 %v547
    %581 = vmatprep.subr.mxu0 %v550
    %582 = vmatpush1.msra.mxu0 %v549
    %583 = vmatprep.subr.mxu0 0.0
    %584 = vmatpush1.msra.mxu0 0.0
    %585 = vmatprep.subr.mxu0 0.0
    %586 = vmatpush1.msra.mxu0 0.0
    %587 = vmatprep.subr.mxu0 0.0
    %588 = vmatpush1.msra.mxu0 0.0
    %589 = vmatprep.subr.mxu0 0.0
    %590 = vmatpush1.msra.mxu0 0.0
    %591 = vmatprep.subr.mxu0 0.0
    %592 = vmatpush1.msra.mxu0 0.0
    %593 = vmatprep.subr.mxu0 0.0
    %594 = vmatpush1.msra.mxu0 0.0
    %595 = vmatprep.subr.mxu0 0.0
    %596 = vmatpush1.msra.mxu0 0.0
    %597 = vmatprep.subr.mxu0 0.0
    %598 = vmatpush1.msra.mxu0 0.0
    %599 = vmatprep.subr.mxu0 0.0
    %600 = vmatpush1.msra.mxu0 0.0
    %601 = vmatprep.subr.mxu0 0.0
    %602 = vmatpush1.msra.mxu0 0.0
    %603 = vmatprep.subr.mxu0 0.0
    %604 = vmatpush1.msra.mxu0 0.0
    %605 = vmatprep.subr.mxu0 0.0
    %606 = vmatpush1.msra.mxu0 0.0
    %607 = vmatprep.subr.mxu0 0.0
    %608 = vmatpush1.msra.mxu0 0.0
    %609 = vmatprep.subr.mxu0 0.0
    %610 = vmatpush1.msra.mxu0 0.0
    %611 = vmatprep.subr.mxu0 0.0
    %612 = vmatpush1.msra.mxu0 0.0
    %613 = vmatprep.subr.mxu0 0.0
    %614 = vmatpush1.msra.mxu0 0.0
    %615 = vmatprep.mubr.f32.mxu0 0.0
    %616 = vmatmul.mubr.f32.gmra.mrb[0].mxu0 %v512
    %v617 = vpop.f32.mrb[0].mxu0
    %v618 = vadd.f32 0.0, %v617
    %v619 = vpop.f32.mrb[0].mxu0
    %v620 = vadd.f32 0.0, %v619
    %621 = vmatprep.mubr.f32.mxu0 0.0
    %622 = vmatmul.mubr.f32.gmra.mrb[0].mxu0 %v513
    %v623 = vpop.f32.mrb[0].mxu0
    %v624 = vadd.f32 0.0, %v623
    %v625 = vpop.f32.mrb[0].mxu0
    %v626 = vadd.f32 0.0, %v625
    %627 = vmatprep.mubr.f32.mxu0 0.0
    %628 = vmatmul.mubr.f32.gmra.mrb[0].mxu0 %v514
    %v629 = vpop.f32.mrb[0].mxu0
    %v630 = vadd.f32 0.0, %v629
    %v631 = vpop.f32.mrb[0].mxu0
    %v632 = vadd.f32 0.0, %v631
    %633 = vmatprep.mubr.f32.mxu0 0.0
    %634 = vmatmul.mubr.f32.gmra.mrb[0].mxu0 %v515
    %v635 = vpop.f32.mrb[0].mxu0
    %v636 = vadd.f32 0.0, %v635
    %v637 = vpop.f32.mrb[0].mxu0
    %v638 = vadd.f32 0.0, %v637
    %639 = vdwg.mxu0
    %v640 = vrot.slane %v618, 6
    %v641 = vrot.slane %v624, 6
    %v642 = vrot.slane %v630, 6
    %v643 = vrot.slane %v636, 6
    %vm644 = vcmp.lt.s32.totalorder %v71, 2
    %v645 = vsel %vm644, %v642, %v643
    %v646 = vsel %vm644, %v641, %v642
    %v647 = vsel %vm644, %v640, %v641
    %v648 = vsel %vm644, %v643, %v640
    %v649 = vsel %vm516, %v648, 0.0
    %v650 = vsel %vm517, %v647, 0.0
    %v651 = vsel %vm516, %v646, 0.0
    %v652 = vsel %vm517, %v645, 0.0
    %v653 = vadd.f32 %v649, %v620
    %v654 = vadd.f32 %v650, %v626
    %v655 = vadd.f32 %v651, %v632
    %v656 = vadd.f32 %v652, %v638
    %s657 = scalar_lea.vmem %s3, 1
    %v658 = vld [vmem:[%s657] sm:$0x1]
    %v660 = vlaneseq
    %v661 = vshrl.u32 %v660, 7
    %v662 = vsub.s32 0, %v661
    %v663 = vrot.slane %v658, %v662
    %v665 = vadd.f32 %v653, %v663
    %v666 = vadd.f32 %v654, %v663
    %v667 = vadd.f32 %v655, %v663
    %v668 = vadd.f32 %v656, %v663
    %vm669 = vcmp.gt.f32.partialorder %v665, 0.0
    %vm670 = vcmp.gt.f32.partialorder %v666, 0.0
    %vm671 = vcmp.gt.f32.partialorder %v667, 0.0
    %vm672 = vcmp.gt.f32.partialorder %v668, 0.0
    %v673 = vmul.f32 %v665, 0.01
    %v674 = vmul.f32 %v666, 0.01
    %v675 = vmul.f32 %v667, 0.01
    %v676 = vmul.f32 %v668, 0.01
    %v677 = vsel %vm669, %v665, %v673
    %v678 = vsel %vm670, %v666, %v674
    %v679 = vsel %vm671, %v667, %v675
    %v680 = vsel %vm672, %v668, %v676
    %s681 = scalar_lea.vmem [#allocation9], 256
    %v682 = vld [vmem:[%s681] sm:$0xff]
    %v683 = vld [vmem:[%s681 + $0x8] sm:$0xff]
    %v684 = vld [vmem:[%s681 + $0x10] sm:$0xff]
    %v685 = vld [vmem:[%s681 + $0x18] sm:$0xff]
    %v686 = vld [vmem:[%s681 + $0x20] sm:$0xff]
    %v687 = vld [vmem:[%s681 + $0x28] sm:$0xff]
    %v688 = vld [vmem:[%s681 + $0x30] sm:$0xff]
    %v689 = vld [vmem:[%s681 + $0x38] sm:$0xff]
    %v690 = vld [vmem:[%s681 + $0x40] sm:$0xff]
    %v691 = vld [vmem:[%s681 + $0x48] sm:$0xff]
    %v692 = vld [vmem:[%s681 + $0x50] sm:$0xff]
    %v693 = vld [vmem:[%s681 + $0x58] sm:$0xff]
    %v694 = vld [vmem:[%s681 + $0x60] sm:$0xff]
    %v695 = vld [vmem:[%s681 + $0x68] sm:$0xff]
    %v696 = vld [vmem:[%s681 + $0x70] sm:$0xff]
    %v697 = vld [vmem:[%s681 + $0x78] sm:$0xff]
    %v698 = vld [vmem:[%s681 + $0x80] sm:$0xff]
    %v699 = vld [vmem:[%s681 + $0x88] sm:$0xff]
    %v700 = vld [vmem:[%s681 + $0x90] sm:$0xff]
    %v701 = vld [vmem:[%s681 + $0x98] sm:$0xff]
    %v702 = vld [vmem:[%s681 + $0xa0] sm:$0xff]
    %v703 = vld [vmem:[%s681 + $0xa8] sm:$0xff]
    %v704 = vld [vmem:[%s681 + $0xb0] sm:$0xff]
    %v705 = vld [vmem:[%s681 + $0xb8] sm:$0xff]
    %v706 = vld [vmem:[%s681 + $0xc0] sm:$0xff]
    %v707 = vld [vmem:[%s681 + $0xc8] sm:$0xff]
    %v708 = vld [vmem:[%s681 + $0xd0] sm:$0xff]
    %v709 = vld [vmem:[%s681 + $0xd8] sm:$0xff]
    %v710 = vld [vmem:[%s681 + $0xe0] sm:$0xff]
    %v711 = vld [vmem:[%s681 + $0xe8] sm:$0xff]
    %v712 = vld [vmem:[%s681 + $0xf0] sm:$0xff]
    %v713 = vld [vmem:[%s681 + $0xf8] sm:$0xff]
    %714 = vmatprep.subr.mxu0 %v683
    %715 = vmatpush1.msra.mxu0 %v682
    %716 = vmatprep.subr.mxu0 %v685
    %717 = vmatpush1.msra.mxu0 %v684
    %718 = vmatprep.subr.mxu0 %v687
    %719 = vmatpush1.msra.mxu0 %v686
    %720 = vmatprep.subr.mxu0 %v689
    %721 = vmatpush1.msra.mxu0 %v688
    %722 = vmatprep.subr.mxu0 %v691
    %723 = vmatpush1.msra.mxu0 %v690
    %724 = vmatprep.subr.mxu0 %v693
    %725 = vmatpush1.msra.mxu0 %v692
    %726 = vmatprep.subr.mxu0 %v695
    %727 = vmatpush1.msra.mxu0 %v694
    %728 = vmatprep.subr.mxu0 %v697
    %729 = vmatpush1.msra.mxu0 %v696
    %730 = vmatprep.subr.mxu0 %v699
    %731 = vmatpush1.msra.mxu0 %v698
    %732 = vmatprep.subr.mxu0 %v701
    %733 = vmatpush1.msra.mxu0 %v700
    %734 = vmatprep.subr.mxu0 %v703
    %735 = vmatpush1.msra.mxu0 %v702
    %736 = vmatprep.subr.mxu0 %v705
    %737 = vmatpush1.msra.mxu0 %v704
    %738 = vmatprep.subr.mxu0 %v707
    %739 = vmatpush1.msra.mxu0 %v706
    %740 = vmatprep.subr.mxu0 %v709
    %741 = vmatpush1.msra.mxu0 %v708
    %742 = vmatprep.subr.mxu0 %v711
    %743 = vmatpush1.msra.mxu0 %v710
    %744 = vmatprep.subr.mxu0 %v713
    %745 = vmatpush1.msra.mxu0 %v712
    %746 = vmatprep.subr.mxu0 0.0
    %747 = vmatpush1.msra.mxu0 0.0
    %748 = vmatprep.subr.mxu0 0.0
    %749 = vmatpush1.msra.mxu0 0.0
    %750 = vmatprep.subr.mxu0 0.0
    %751 = vmatpush1.msra.mxu0 0.0
    %752 = vmatprep.subr.mxu0 0.0
    %753 = vmatpush1.msra.mxu0 0.0
    %754 = vmatprep.subr.mxu0 0.0
    %755 = vmatpush1.msra.mxu0 0.0
    %756 = vmatprep.subr.mxu0 0.0
    %757 = vmatpush1.msra.mxu0 0.0
    %758 = vmatprep.subr.mxu0 0.0
    %759 = vmatpush1.msra.mxu0 0.0
    %760 = vmatprep.subr.mxu0 0.0
    %761 = vmatpush1.msra.mxu0 0.0
    %762 = vmatprep.subr.mxu0 0.0
    %763 = vmatpush1.msra.mxu0 0.0
    %764 = vmatprep.subr.mxu0 0.0
    %765 = vmatpush1.msra.mxu0 0.0
    %766 = vmatprep.subr.mxu0 0.0
    %767 = vmatpush1.msra.mxu0 0.0
    %768 = vmatprep.subr.mxu0 0.0
    %769 = vmatpush1.msra.mxu0 0.0
    %770 = vmatprep.subr.mxu0 0.0
    %771 = vmatpush1.msra.mxu0 0.0
    %772 = vmatprep.subr.mxu0 0.0
    %773 = vmatpush1.msra.mxu0 0.0
    %774 = vmatprep.subr.mxu0 0.0
    %775 = vmatpush1.msra.mxu0 0.0
    %776 = vmatprep.subr.mxu0 0.0
    %777 = vmatpush1.msra.mxu0 0.0
    %778 = vmatprep.mubr.f32.mxu0 0.0
    %779 = vmatmul.mubr.f32.gmra.mrb[0].mxu0 %v677
    %v780 = vpop.f32.mrb[0].mxu0
    %v781 = vadd.f32 0.0, %v780
    %v782 = vpop.f32.mrb[0].mxu0
    %v783 = vadd.f32 0.0, %v782
    %784 = vmatprep.mubr.f32.mxu0 0.0
    %785 = vmatmul.mubr.f32.gmra.mrb[0].mxu0 %v678
    %v786 = vpop.f32.mrb[0].mxu0
    %v787 = vadd.f32 0.0, %v786
    %v788 = vpop.f32.mrb[0].mxu0
    %v789 = vadd.f32 0.0, %v788
    %790 = vmatprep.mubr.f32.mxu0 0.0
    %791 = vmatmul.mubr.f32.gmra.mrb[0].mxu0 %v679
    %v792 = vpop.f32.mrb[0].mxu0
    %v793 = vadd.f32 0.0, %v792
    %v794 = vpop.f32.mrb[0].mxu0
    %v795 = vadd.f32 0.0, %v794
    %796 = vmatprep.mubr.f32.mxu0 0.0
    %797 = vmatmul.mubr.f32.gmra.mrb[0].mxu0 %v680
    %v798 = vpop.f32.mrb[0].mxu0
    %v799 = vadd.f32 0.0, %v798
    %v800 = vpop.f32.mrb[0].mxu0
    %v801 = vadd.f32 0.0, %v800
    %802 = vdwg.mxu0
    %v803 = vrot.slane %v781, 6
    %v804 = vrot.slane %v787, 6
    %v805 = vrot.slane %v793, 6
    %v806 = vrot.slane %v799, 6
    %v807 = vsel %vm644, %v805, %v806
    %v808 = vsel %vm644, %v804, %v805
    %v809 = vsel %vm644, %v803, %v804
    %v810 = vsel %vm644, %v806, %v803
    %v811 = vsel %vm516, %v810, 0.0
    %v812 = vsel %vm517, %v809, 0.0
    %v813 = vsel %vm516, %v808, 0.0
    %v814 = vsel %vm517, %v807, 0.0
    %v815 = vadd.f32 %v811, %v783
    %v816 = vadd.f32 %v812, %v789
    %v817 = vadd.f32 %v813, %v795
    %v818 = vadd.f32 %v814, %v801
    %s819 = scalar_lea.vmem %s5, 1
    %v820 = vld [vmem:[%s819] sm:$0x1]
    %v822 = vlaneseq
    %v823 = vshrl.u32 %v822, 7
    %v824 = vsub.s32 0, %v823
    %v825 = vrot.slane %v820, %v824
    %v827 = vadd.f32 %v815, %v825
    %v828 = vadd.f32 %v816, %v825
    %v829 = vadd.f32 %v817, %v825
    %v830 = vadd.f32 %v818, %v825
    %vm831 = vcmp.gt.f32.partialorder %v827, 0.0
    %vm832 = vcmp.gt.f32.partialorder %v828, 0.0
    %vm833 = vcmp.gt.f32.partialorder %v829, 0.0
    %vm834 = vcmp.gt.f32.partialorder %v830, 0.0
    %v835 = vmul.f32 %v827, 0.01
    %v836 = vmul.f32 %v828, 0.01
    %v837 = vmul.f32 %v829, 0.01
    %v838 = vmul.f32 %v830, 0.01
    %v839 = vsel %vm831, %v827, %v835
    %v840 = vsel %vm832, %v828, %v836
    %v841 = vsel %vm833, %v829, %v837
    %v842 = vsel %vm834, %v830, %v838
    %v843 = vadd.f32 %v839, %v512
    %v844 = vadd.f32 %v840, %v513
    %v845 = vadd.f32 %v841, %v514
    %v846 = vadd.f32 %v842, %v515
    %vm847 = vcmp.ge.s32.totalorder %v71, 4
    %vm848 = vcmp.ge.s32.totalorder %v72, 4
    %s849 = scalar_lea.vmem [#allocation7], 768
    %v850 = vld [vmem:[%s849] sm:$0xff]
    %v851 = vld [vmem:[%s849 + $0x8] sm:$0xff]
    %v852 = vld [vmem:[%s849 + $0x18] sm:$0xff]
    %v853 = vld [vmem:[%s849 + $0x20] sm:$0xff]
    %v854 = vld [vmem:[%s849 + $0x30] sm:$0xff]
    %v855 = vld [vmem:[%s849 + $0x38] sm:$0xff]
    %v856 = vld [vmem:[%s849 + $0x48] sm:$0xff]
    %v857 = vld [vmem:[%s849 + $0x50] sm:$0xff]
    %v858 = vld [vmem:[%s849 + $0x60] sm:$0xff]
    %v859 = vld [vmem:[%s849 + $0x68] sm:$0xff]
    %v860 = vld [vmem:[%s849 + $0x78] sm:$0xff]
    %v861 = vld [vmem:[%s849 + $0x80] sm:$0xff]
    %v862 = vld [vmem:[%s849 + $0x90] sm:$0xff]
    %v863 = vld [vmem:[%s849 + $0x98] sm:$0xff]
    %v864 = vld [vmem:[%s849 + $0xa8] sm:$0xff]
    %v865 = vld [vmem:[%s849 + $0xb0] sm:$0xff]
    %v866 = vld [vmem:[%s849 + $0xc0] sm:$0xff]
    %v867 = vld [vmem:[%s849 + $0xc8] sm:$0xff]
    %v868 = vld [vmem:[%s849 + $0xd8] sm:$0xff]
    %v869 = vld [vmem:[%s849 + $0xe0] sm:$0xff]
    %v870 = vld [vmem:[%s849 + $0xf0] sm:$0xff]
    %v871 = vld [vmem:[%s849 + $0xf8] sm:$0xff]
    %v872 = vld [vmem:[%s849 + $0x108] sm:$0xff]
    %v873 = vld [vmem:[%s849 + $0x110] sm:$0xff]
    %v874 = vld [vmem:[%s849 + $0x120] sm:$0xff]
    %v875 = vld [vmem:[%s849 + $0x128] sm:$0xff]
    %v876 = vld [vmem:[%s849 + $0x138] sm:$0xff]
    %v877 = vld [vmem:[%s849 + $0x140] sm:$0xff]
    %v878 = vld [vmem:[%s849 + $0x150] sm:$0xff]
    %v879 = vld [vmem:[%s849 + $0x158] sm:$0xff]
    %v880 = vld [vmem:[%s849 + $0x168] sm:$0xff]
    %v881 = vld [vmem:[%s849 + $0x170] sm:$0xff]
    %882 = vmatprep.subr.mxu0 %v851
    %883 = vmatpush1.msra.mxu0 %v850
    %884 = vmatprep.subr.mxu0 %v853
    %885 = vmatpush1.msra.mxu0 %v852
    %886 = vmatprep.subr.mxu0 %v855
    %887 = vmatpush1.msra.mxu0 %v854
    %888 = vmatprep.subr.mxu0 %v857
    %889 = vmatpush1.msra.mxu0 %v856
    %890 = vmatprep.subr.mxu0 %v859
    %891 = vmatpush1.msra.mxu0 %v858
    %892 = vmatprep.subr.mxu0 %v861
    %893 = vmatpush1.msra.mxu0 %v860
    %894 = vmatprep.subr.mxu0 %v863
    %895 = vmatpush1.msra.mxu0 %v862
    %896 = vmatprep.subr.mxu0 %v865
    %897 = vmatpush1.msra.mxu0 %v864
    %898 = vmatprep.subr.mxu0 %v867
    %899 = vmatpush1.msra.mxu0 %v866
    %900 = vmatprep.subr.mxu0 %v869
    %901 = vmatpush1.msra.mxu0 %v868
    %902 = vmatprep.subr.mxu0 %v871
    %903 = vmatpush1.msra.mxu0 %v870
    %904 = vmatprep.subr.mxu0 %v873
    %905 = vmatpush1.msra.mxu0 %v872
    %906 = vmatprep.subr.mxu0 %v875
    %907 = vmatpush1.msra.mxu0 %v874
    %908 = vmatprep.subr.mxu0 %v877
    %909 = vmatpush1.msra.mxu0 %v876
    %910 = vmatprep.subr.mxu0 %v879
    %911 = vmatpush1.msra.mxu0 %v878
    %912 = vmatprep.subr.mxu0 %v881
    %913 = vmatpush1.msra.mxu0 %v880
    %914 = vmatprep.subr.mxu0 0.0
    %915 = vmatpush1.msra.mxu0 0.0
    %916 = vmatprep.subr.mxu0 0.0
    %917 = vmatpush1.msra.mxu0 0.0
    %918 = vmatprep.subr.mxu0 0.0
    %919 = vmatpush1.msra.mxu0 0.0
    %920 = vmatprep.subr.mxu0 0.0
    %921 = vmatpush1.msra.mxu0 0.0
    %922 = vmatprep.subr.mxu0 0.0
    %923 = vmatpush1.msra.mxu0 0.0
    %924 = vmatprep.subr.mxu0 0.0
    %925 = vmatpush1.msra.mxu0 0.0
    %926 = vmatprep.subr.mxu0 0.0
    %927 = vmatpush1.msra.mxu0 0.0
    %928 = vmatprep.subr.mxu0 0.0
    %929 = vmatpush1.msra.mxu0 0.0
    %930 = vmatprep.subr.mxu0 0.0
    %931 = vmatpush1.msra.mxu0 0.0
    %932 = vmatprep.subr.mxu0 0.0
    %933 = vmatpush1.msra.mxu0 0.0
    %934 = vmatprep.subr.mxu0 0.0
    %935 = vmatpush1.msra.mxu0 0.0
    %936 = vmatprep.subr.mxu0 0.0
    %937 = vmatpush1.msra.mxu0 0.0
    %938 = vmatprep.subr.mxu0 0.0
    %939 = vmatpush1.msra.mxu0 0.0
    %940 = vmatprep.subr.mxu0 0.0
    %941 = vmatpush1.msra.mxu0 0.0
    %942 = vmatprep.subr.mxu0 0.0
    %943 = vmatpush1.msra.mxu0 0.0
    %944 = vmatprep.subr.mxu0 0.0
    %945 = vmatpush1.msra.mxu0 0.0
    %946 = vmatprep.mubr.f32.mxu0 0.0
    %947 = vmatmul.mubr.f32.gmra.mrb[0].mxu0 %v843
    %v948 = vpop.f32.mrb[0].mxu0
    %v949 = vadd.f32 0.0, %v948
    %v950 = vpop.f32.mrb[0].mxu0
    %v951 = vadd.f32 0.0, %v950
    %952 = vmatprep.mubr.f32.mxu0 0.0
    %953 = vmatmul.mubr.f32.gmra.mrb[0].mxu0 %v844
    %v954 = vpop.f32.mrb[0].mxu0
    %v955 = vadd.f32 0.0, %v954
    %v956 = vpop.f32.mrb[0].mxu0
    %v957 = vadd.f32 0.0, %v956
    %958 = vmatprep.mubr.f32.mxu0 0.0
    %959 = vmatmul.mubr.f32.gmra.mrb[0].mxu0 %v845
    %v960 = vpop.f32.mrb[0].mxu0
    %v961 = vadd.f32 0.0, %v960
    %v962 = vpop.f32.mrb[0].mxu0
    %v963 = vadd.f32 0.0, %v962
    %964 = vmatprep.mubr.f32.mxu0 0.0
    %965 = vmatmul.mubr.f32.gmra.mrb[0].mxu0 %v846
    %v966 = vpop.f32.mrb[0].mxu0
    %v967 = vadd.f32 0.0, %v966
    %v968 = vpop.f32.mrb[0].mxu0
    %v969 = vadd.f32 0.0, %v968
    %970 = vdwg.mxu0
    %v971 = vrot.slane %v949, 4
    %v972 = vrot.slane %v955, 4
    %v973 = vrot.slane %v961, 4
    %v974 = vrot.slane %v967, 4
    %vm975 = vcmp.lt.s32.totalorder %v71, 4
    %v976 = vsel %vm975, %v973, %v974
    %v977 = vsel %vm975, %v972, %v973
    %v978 = vsel %vm975, %v971, %v972
    %v979 = vsel %vm975, %v974, %v971
    %v980 = vsel %vm847, %v979, 0.0
    %v981 = vsel %vm848, %v978, 0.0
    %v982 = vsel %vm847, %v977, 0.0
    %v983 = vsel %vm848, %v976, 0.0
    %v984 = vadd.f32 %v980, %v951
    %v985 = vadd.f32 %v981, %v957
    %v986 = vadd.f32 %v982, %v963
    %v987 = vadd.f32 %v983, %v969
    %s988 = scalar_lea.vmem %s3, 2
    %v989 = vld [vmem:[%s988] sm:$0x1]
    %v991 = vlaneseq
    %v992 = vshrl.u32 %v991, 7
    %v993 = vsub.s32 0, %v992
    %v994 = vrot.slane %v989, %v993
    %v996 = vadd.f32 %v984, %v994
    %v997 = vadd.f32 %v985, %v994
    %v998 = vadd.f32 %v986, %v994
    %v999 = vadd.f32 %v987, %v994
    %vm1000 = vcmp.gt.f32.partialorder %v996, 0.0
    %vm1001 = vcmp.gt.f32.partialorder %v997, 0.0
    %vm1002 = vcmp.gt.f32.partialorder %v998, 0.0
    %vm1003 = vcmp.gt.f32.partialorder %v999, 0.0
    %v1004 = vmul.f32 %v996, 0.01
    %v1005 = vmul.f32 %v997, 0.01
    %v1006 = vmul.f32 %v998, 0.01
    %v1007 = vmul.f32 %v999, 0.01
    %v1008 = vsel %vm1000, %v996, %v1004
    %v1009 = vsel %vm1001, %v997, %v1005
    %v1010 = vsel %vm1002, %v998, %v1006
    %v1011 = vsel %vm1003, %v999, %v1007
    %s1012 = scalar_lea.vmem [#allocation9], 512
    %v1013 = vld [vmem:[%s1012] sm:$0xff]
    %v1014 = vld [vmem:[%s1012 + $0x8] sm:$0xff]
    %v1015 = vld [vmem:[%s1012 + $0x10] sm:$0xff]
    %v1016 = vld [vmem:[%s1012 + $0x18] sm:$0xff]
    %v1017 = vld [vmem:[%s1012 + $0x20] sm:$0xff]
    %v1018 = vld [vmem:[%s1012 + $0x28] sm:$0xff]
    %v1019 = vld [vmem:[%s1012 + $0x30] sm:$0xff]
    %v1020 = vld [vmem:[%s1012 + $0x38] sm:$0xff]
    %v1021 = vld [vmem:[%s1012 + $0x40] sm:$0xff]
    %v1022 = vld [vmem:[%s1012 + $0x48] sm:$0xff]
    %v1023 = vld [vmem:[%s1012 + $0x50] sm:$0xff]
    %v1024 = vld [vmem:[%s1012 + $0x58] sm:$0xff]
    %v1025 = vld [vmem:[%s1012 + $0x60] sm:$0xff]
    %v1026 = vld [vmem:[%s1012 + $0x68] sm:$0xff]
    %v1027 = vld [vmem:[%s1012 + $0x70] sm:$0xff]
    %v1028 = vld [vmem:[%s1012 + $0x78] sm:$0xff]
    %v1029 = vld [vmem:[%s1012 + $0x80] sm:$0xff]
    %v1030 = vld [vmem:[%s1012 + $0x88] sm:$0xff]
    %v1031 = vld [vmem:[%s1012 + $0x90] sm:$0xff]
    %v1032 = vld [vmem:[%s1012 + $0x98] sm:$0xff]
    %v1033 = vld [vmem:[%s1012 + $0xa0] sm:$0xff]
    %v1034 = vld [vmem:[%s1012 + $0xa8] sm:$0xff]
    %v1035 = vld [vmem:[%s1012 + $0xb0] sm:$0xff]
    %v1036 = vld [vmem:[%s1012 + $0xb8] sm:$0xff]
    %v1037 = vld [vmem:[%s1012 + $0xc0] sm:$0xff]
    %v1038 = vld [vmem:[%s1012 + $0xc8] sm:$0xff]
    %v1039 = vld [vmem:[%s1012 + $0xd0] sm:$0xff]
    %v1040 = vld [vmem:[%s1012 + $0xd8] sm:$0xff]
    %v1041 = vld [vmem:[%s1012 + $0xe0] sm:$0xff]
    %v1042 = vld [vmem:[%s1012 + $0xe8] sm:$0xff]
    %v1043 = vld [vmem:[%s1012 + $0xf0] sm:$0xff]
    %v1044 = vld [vmem:[%s1012 + $0xf8] sm:$0xff]
    %1045 = vmatprep.subr.mxu0 %v1014
    %1046 = vmatpush1.msra.mxu0 %v1013
    %1047 = vmatprep.subr.mxu0 %v1016
    %1048 = vmatpush1.msra.mxu0 %v1015
    %1049 = vmatprep.subr.mxu0 %v1018
    %1050 = vmatpush1.msra.mxu0 %v1017
    %1051 = vmatprep.subr.mxu0 %v1020
    %1052 = vmatpush1.msra.mxu0 %v1019
    %1053 = vmatprep.subr.mxu0 %v1022
    %1054 = vmatpush1.msra.mxu0 %v1021
    %1055 = vmatprep.subr.mxu0 %v1024
    %1056 = vmatpush1.msra.mxu0 %v1023
    %1057 = vmatprep.subr.mxu0 %v1026
    %1058 = vmatpush1.msra.mxu0 %v1025
    %1059 = vmatprep.subr.mxu0 %v1028
    %1060 = vmatpush1.msra.mxu0 %v1027
    %1061 = vmatprep.subr.mxu0 %v1030
    %1062 = vmatpush1.msra.mxu0 %v1029
    %1063 = vmatprep.subr.mxu0 %v1032
    %1064 = vmatpush1.msra.mxu0 %v1031
    %1065 = vmatprep.subr.mxu0 %v1034
    %1066 = vmatpush1.msra.mxu0 %v1033
    %1067 = vmatprep.subr.mxu0 %v1036
    %1068 = vmatpush1.msra.mxu0 %v1035
    %1069 = vmatprep.subr.mxu0 %v1038
    %1070 = vmatpush1.msra.mxu0 %v1037
    %1071 = vmatprep.subr.mxu0 %v1040
    %1072 = vmatpush1.msra.mxu0 %v1039
    %1073 = vmatprep.subr.mxu0 %v1042
    %1074 = vmatpush1.msra.mxu0 %v1041
    %1075 = vmatprep.subr.mxu0 %v1044
    %1076 = vmatpush1.msra.mxu0 %v1043
    %1077 = vmatprep.subr.mxu0 0.0
    %1078 = vmatpush1.msra.mxu0 0.0
    %1079 = vmatprep.subr.mxu0 0.0
    %1080 = vmatpush1.msra.mxu0 0.0
    %1081 = vmatprep.subr.mxu0 0.0
    %1082 = vmatpush1.msra.mxu0 0.0
    %1083 = vmatprep.subr.mxu0 0.0
    %1084 = vmatpush1.msra.mxu0 0.0
    %1085 = vmatprep.subr.mxu0 0.0
    %1086 = vmatpush1.msra.mxu0 0.0
    %1087 = vmatprep.subr.mxu0 0.0
    %1088 = vmatpush1.msra.mxu0 0.0
    %1089 = vmatprep.subr.mxu0 0.0
    %1090 = vmatpush1.msra.mxu0 0.0
    %1091 = vmatprep.subr.mxu0 0.0
    %1092 = vmatpush1.msra.mxu0 0.0
    %1093 = vmatprep.subr.mxu0 0.0
    %1094 = vmatpush1.msra.mxu0 0.0
    %1095 = vmatprep.subr.mxu0 0.0
    %1096 = vmatpush1.msra.mxu0 0.0
    %1097 = vmatprep.subr.mxu0 0.0
    %1098 = vmatpush1.msra.mxu0 0.0
    %1099 = vmatprep.subr.mxu0 0.0
    %1100 = vmatpush1.msra.mxu0 0.0
    %1101 = vmatprep.subr.mxu0 0.0
    %1102 = vmatpush1.msra.mxu0 0.0
    %1103 = vmatprep.subr.mxu0 0.0
    %1104 = vmatpush1.msra.mxu0 0.0
    %1105 = vmatprep.subr.mxu0 0.0
    %1106 = vmatpush1.msra.mxu0 0.0
    %1107 = vmatprep.subr.mxu0 0.0
    %1108 = vmatpush1.msra.mxu0 0.0
    %1109 = vmatprep.mubr.f32.mxu0 0.0
    %1110 = vmatmul.mubr.f32.gmra.mrb[0].mxu0 %v1008
    %v1111 = vpop.f32.mrb[0].mxu0
    %v1112 = vadd.f32 0.0, %v1111
    %v1113 = vpop.f32.mrb[0].mxu0
    %v1114 = vadd.f32 0.0, %v1113
    %1115 = vmatprep.mubr.f32.mxu0 0.0
    %1116 = vmatmul.mubr.f32.gmra.mrb[0].mxu0 %v1009
    %v1117 = vpop.f32.mrb[0].mxu0
    %v1118 = vadd.f32 0.0, %v1117
    %v1119 = vpop.f32.mrb[0].mxu0
    %v1120 = vadd.f32 0.0, %v1119
    %1121 = vmatprep.mubr.f32.mxu0 0.0
    %1122 = vmatmul.mubr.f32.gmra.mrb[0].mxu0 %v1010
    %v1123 = vpop.f32.mrb[0].mxu0
    %v1124 = vadd.f32 0.0, %v1123
    %v1125 = vpop.f32.mrb[0].mxu0
    %v1126 = vadd.f32 0.0, %v1125
    %1127 = vmatprep.mubr.f32.mxu0 0.0
    %1128 = vmatmul.mubr.f32.gmra.mrb[0].mxu0 %v1011
    %v1129 = vpop.f32.mrb[0].mxu0
    %v1130 = vadd.f32 0.0, %v1129
    %v1131 = vpop.f32.mrb[0].mxu0
    %v1132 = vadd.f32 0.0, %v1131
    %1133 = vdwg.mxu0
    %v1134 = vrot.slane %v1112, 4
    %v1135 = vrot.slane %v1118, 4
    %v1136 = vrot.slane %v1124, 4
    %v1137 = vrot.slane %v1130, 4
    %v1138 = vsel %vm975, %v1136, %v1137
    %v1139 = vsel %vm975, %v1135, %v1136
    %v1140 = vsel %vm975, %v1134, %v1135
    %v1141 = vsel %vm975, %v1137, %v1134
    %v1142 = vsel %vm847, %v1141, 0.0
    %v1143 = vsel %vm848, %v1140, 0.0
    %v1144 = vsel %vm847, %v1139, 0.0
    %v1145 = vsel %vm848, %v1138, 0.0
    %v1146 = vadd.f32 %v1142, %v1114
    %v1147 = vadd.f32 %v1143, %v1120
    %v1148 = vadd.f32 %v1144, %v1126
    %v1149 = vadd.f32 %v1145, %v1132
    %s1150 = scalar_lea.vmem %s5, 2
    %v1151 = vld [vmem:[%s1150] sm:$0x1]
    %v1153 = vlaneseq
    %v1154 = vshrl.u32 %v1153, 7
    %v1155 = vsub.s32 0, %v1154
    %v1156 = vrot.slane %v1151, %v1155
    %v1158 = vadd.f32 %v1146, %v1156
    %v1159 = vadd.f32 %v1147, %v1156
    %v1160 = vadd.f32 %v1148, %v1156
    %v1161 = vadd.f32 %v1149, %v1156
    %vm1162 = vcmp.gt.f32.partialorder %v1158, 0.0
    %vm1163 = vcmp.gt.f32.partialorder %v1159, 0.0
    %vm1164 = vcmp.gt.f32.partialorder %v1160, 0.0
    %vm1165 = vcmp.gt.f32.partialorder %v1161, 0.0
    %v1166 = vmul.f32 %v1158, 0.01
    %v1167 = vmul.f32 %v1159, 0.01
    %v1168 = vmul.f32 %v1160, 0.01
    %v1169 = vmul.f32 %v1161, 0.01
    %v1170 = vsel %vm1162, %v1158, %v1166
    %v1171 = vsel %vm1163, %v1159, %v1167
    %v1172 = vsel %vm1164, %v1160, %v1168
    %v1173 = vsel %vm1165, %v1161, %v1169
    %v1174 = vadd.f32 %v1170, %v843
    %v1175 = vadd.f32 %v1171, %v844
    %v1176 = vadd.f32 %v1172, %v845
    %v1177 = vadd.f32 %v1173, %v846
    %vm1178 = vcmp.ge.s32.totalorder %v71, 8
    %vm1179 = vcmp.ge.s32.totalorder %v72, 8
    %s1180 = scalar_lea.vmem [#allocation7], 1152
    %v1181 = vld [vmem:[%s1180] sm:$0xff]
    %v1182 = vld [vmem:[%s1180 + $0x8] sm:$0xff]
    %v1183 = vld [vmem:[%s1180 + $0x18] sm:$0xff]
    %v1184 = vld [vmem:[%s1180 + $0x20] sm:$0xff]
    %v1185 = vld [vmem:[%s1180 + $0x30] sm:$0xff]
    %v1186 = vld [vmem:[%s1180 + $0x38] sm:$0xff]
    %v1187 = vld [vmem:[%s1180 + $0x48] sm:$0xff]
    %v1188 = vld [vmem:[%s1180 + $0x50] sm:$0xff]
    %v1189 = vld [vmem:[%s1180 + $0x60] sm:$0xff]
    %v1190 = vld [vmem:[%s1180 + $0x68] sm:$0xff]
    %v1191 = vld [vmem:[%s1180 + $0x78] sm:$0xff]
    %v1192 = vld [vmem:[%s1180 + $0x80] sm:$0xff]
    %v1193 = vld [vmem:[%s1180 + $0x90] sm:$0xff]
    %v1194 = vld [vmem:[%s1180 + $0x98] sm:$0xff]
    %v1195 = vld [vmem:[%s1180 + $0xa8] sm:$0xff]
    %v1196 = vld [vmem:[%s1180 + $0xb0] sm:$0xff]
    %v1197 = vld [vmem:[%s1180 + $0xc0] sm:$0xff]
    %v1198 = vld [vmem:[%s1180 + $0xc8] sm:$0xff]
    %v1199 = vld [vmem:[%s1180 + $0xd8] sm:$0xff]
    %v1200 = vld [vmem:[%s1180 + $0xe0] sm:$0xff]
    %v1201 = vld [vmem:[%s1180 + $0xf0] sm:$0xff]
    %v1202 = vld [vmem:[%s1180 + $0xf8] sm:$0xff]
    %v1203 = vld [vmem:[%s1180 + $0x108] sm:$0xff]
    %v1204 = vld [vmem:[%s1180 + $0x110] sm:$0xff]
    %v1205 = vld [vmem:[%s1180 + $0x120] sm:$0xff]
    %v1206 = vld [vmem:[%s1180 + $0x128] sm:$0xff]
    %v1207 = vld [vmem:[%s1180 + $0x138] sm:$0xff]
    %v1208 = vld [vmem:[%s1180 + $0x140] sm:$0xff]
    %v1209 = vld [vmem:[%s1180 + $0x150] sm:$0xff]
    %v1210 = vld [vmem:[%s1180 + $0x158] sm:$0xff]
    %v1211 = vld [vmem:[%s1180 + $0x168] sm:$0xff]
    %v1212 = vld [vmem:[%s1180 + $0x170] sm:$0xff]
    %1213 = vmatprep.subr.mxu0 %v1182
    %1214 = vmatpush1.msra.mxu0 %v1181
    %1215 = vmatprep.subr.mxu0 %v1184
    %1216 = vmatpush1.msra.mxu0 %v1183
    %1217 = vmatprep.subr.mxu0 %v1186
    %1218 = vmatpush1.msra.mxu0 %v1185
    %1219 = vmatprep.subr.mxu0 %v1188
    %1220 = vmatpush1.msra.mxu0 %v1187
    %1221 = vmatprep.subr.mxu0 %v1190
    %1222 = vmatpush1.msra.mxu0 %v1189
    %1223 = vmatprep.subr.mxu0 %v1192
    %1224 = vmatpush1.msra.mxu0 %v1191
    %1225 = vmatprep.subr.mxu0 %v1194
    %1226 = vmatpush1.msra.mxu0 %v1193
    %1227 = vmatprep.subr.mxu0 %v1196
    %1228 = vmatpush1.msra.mxu0 %v1195
    %1229 = vmatprep.subr.mxu0 %v1198
    %1230 = vmatpush1.msra.mxu0 %v1197
    %1231 = vmatprep.subr.mxu0 %v1200
    %1232 = vmatpush1.msra.mxu0 %v1199
    %1233 = vmatprep.subr.mxu0 %v1202
    %1234 = vmatpush1.msra.mxu0 %v1201
    %1235 = vmatprep.subr.mxu0 %v1204
    %1236 = vmatpush1.msra.mxu0 %v1203
    %1237 = vmatprep.subr.mxu0 %v1206
    %1238 = vmatpush1.msra.mxu0 %v1205
    %1239 = vmatprep.subr.mxu0 %v1208
    %1240 = vmatpush1.msra.mxu0 %v1207
    %1241 = vmatprep.subr.mxu0 %v1210
    %1242 = vmatpush1.msra.mxu0 %v1209
    %1243 = vmatprep.subr.mxu0 %v1212
    %1244 = vmatpush1.msra.mxu0 %v1211
    %1245 = vmatprep.subr.mxu0 0.0
    %1246 = vmatpush1.msra.mxu0 0.0
    %1247 = vmatprep.subr.mxu0 0.0
    %1248 = vmatpush1.msra.mxu0 0.0
    %1249 = vmatprep.subr.mxu0 0.0
    %1250 = vmatpush1.msra.mxu0 0.0
    %1251 = vmatprep.subr.mxu0 0.0
    %1252 = vmatpush1.msra.mxu0 0.0
    %1253 = vmatprep.subr.mxu0 0.0
    %1254 = vmatpush1.msra.mxu0 0.0
    %1255 = vmatprep.subr.mxu0 0.0
    %1256 = vmatpush1.msra.mxu0 0.0
    %1257 = vmatprep.subr.mxu0 0.0
    %1258 = vmatpush1.msra.mxu0 0.0
    %1259 = vmatprep.subr.mxu0 0.0
    %1260 = vmatpush1.msra.mxu0 0.0
    %1261 = vmatprep.subr.mxu0 0.0
    %1262 = vmatpush1.msra.mxu0 0.0
    %1263 = vmatprep.subr.mxu0 0.0
    %1264 = vmatpush1.msra.mxu0 0.0
    %1265 = vmatprep.subr.mxu0 0.0
    %1266 = vmatpush1.msra.mxu0 0.0
    %1267 = vmatprep.subr.mxu0 0.0
    %1268 = vmatpush1.msra.mxu0 0.0
    %1269 = vmatprep.subr.mxu0 0.0
    %1270 = vmatpush1.msra.mxu0 0.0
    %1271 = vmatprep.subr.mxu0 0.0
    %1272 = vmatpush1.msra.mxu0 0.0
    %1273 = vmatprep.subr.mxu0 0.0
    %1274 = vmatpush1.msra.mxu0 0.0
    %1275 = vmatprep.subr.mxu0 0.0
    %1276 = vmatpush1.msra.mxu0 0.0
    %1277 = vmatprep.mubr.f32.mxu0 0.0
    %1278 = vmatmul.mubr.f32.gmra.mrb[0].mxu0 %v1174
    %v1279 = vpop.f32.mrb[0].mxu0
    %v1280 = vadd.f32 0.0, %v1279
    %v1281 = vpop.f32.mrb[0].mxu0
    %v1282 = vadd.f32 0.0, %v1281
    %1283 = vmatprep.mubr.f32.mxu0 0.0
    %1284 = vmatmul.mubr.f32.gmra.mrb[0].mxu0 %v1175
    %v1285 = vpop.f32.mrb[0].mxu0
    %v1286 = vadd.f32 0.0, %v1285
    %v1287 = vpop.f32.mrb[0].mxu0
    %v1288 = vadd.f32 0.0, %v1287
    %1289 = vmatprep.mubr.f32.mxu0 0.0
    %1290 = vmatmul.mubr.f32.gmra.mrb[0].mxu0 %v1176
    %v1291 = vpop.f32.mrb[0].mxu0
    %v1292 = vadd.f32 0.0, %v1291
    %v1293 = vpop.f32.mrb[0].mxu0
    %v1294 = vadd.f32 0.0, %v1293
    %1295 = vmatprep.mubr.f32.mxu0 0.0
    %1296 = vmatmul.mubr.f32.gmra.mrb[0].mxu0 %v1177
    %v1297 = vpop.f32.mrb[0].mxu0
    %v1298 = vadd.f32 0.0, %v1297
    %v1299 = vpop.f32.mrb[0].mxu0
    %v1300 = vadd.f32 0.0, %v1299
    %1301 = vdwg.mxu0
    %v1302 = vsel %vm1178, %v1298, 0.0
    %v1303 = vsel %vm1179, %v1280, 0.0
    %v1304 = vsel %vm1178, %v1286, 0.0
    %v1305 = vsel %vm1179, %v1292, 0.0
    %v1306 = vadd.f32 %v1302, %v1282
    %v1307 = vadd.f32 %v1303, %v1288
    %v1308 = vadd.f32 %v1304, %v1294
    %v1309 = vadd.f32 %v1305, %v1300
    %s1310 = scalar_lea.vmem %s3, 3
    %v1311 = vld [vmem:[%s1310] sm:$0x1]
    %v1313 = vlaneseq
    %v1314 = vshrl.u32 %v1313, 7
    %v1315 = vsub.s32 0, %v1314
    %v1316 = vrot.slane %v1311, %v1315
    %v1318 = vadd.f32 %v1306, %v1316
    %v1319 = vadd.f32 %v1307, %v1316
    %v1320 = vadd.f32 %v1308, %v1316
    %v1321 = vadd.f32 %v1309, %v1316
    %vm1322 = vcmp.gt.f32.partialorder %v1318, 0.0
    %vm1323 = vcmp.gt.f32.partialorder %v1319, 0.0
    %vm1324 = vcmp.gt.f32.partialorder %v1320, 0.0
    %vm1325 = vcmp.gt.f32.partialorder %v1321, 0.0
    %v1326 = vmul.f32 %v1318, 0.01
    %v1327 = vmul.f32 %v1319, 0.01
    %v1328 = vmul.f32 %v1320, 0.01
    %v1329 = vmul.f32 %v1321, 0.01
    %v1330 = vsel %vm1322, %v1318, %v1326
    %v1331 = vsel %vm1323, %v1319, %v1327
    %v1332 = vsel %vm1324, %v1320, %v1328
    %v1333 = vsel %vm1325, %v1321, %v1329
    %s1334 = scalar_lea.vmem [#allocation9], 768
    %v1335 = vld [vmem:[%s1334] sm:$0xff]
    %v1336 = vld [vmem:[%s1334 + $0x8] sm:$0xff]
    %v1337 = vld [vmem:[%s1334 + $0x10] sm:$0xff]
    %v1338 = vld [vmem:[%s1334 + $0x18] sm:$0xff]
    %v1339 = vld [vmem:[%s1334 + $0x20] sm:$0xff]
    %v1340 = vld [vmem:[%s1334 + $0x28] sm:$0xff]
    %v1341 = vld [vmem:[%s1334 + $0x30] sm:$0xff]
    %v1342 = vld [vmem:[%s1334 + $0x38] sm:$0xff]
    %v1343 = vld [vmem:[%s1334 + $0x40] sm:$0xff]
    %v1344 = vld [vmem:[%s1334 + $0x48] sm:$0xff]
    %v1345 = vld [vmem:[%s1334 + $0x50] sm:$0xff]
    %v1346 = vld [vmem:[%s1334 + $0x58] sm:$0xff]
    %v1347 = vld [vmem:[%s1334 + $0x60] sm:$0xff]
    %v1348 = vld [vmem:[%s1334 + $0x68] sm:$0xff]
    %v1349 = vld [vmem:[%s1334 + $0x70] sm:$0xff]
    %v1350 = vld [vmem:[%s1334 + $0x78] sm:$0xff]
    %v1351 = vld [vmem:[%s1334 + $0x80] sm:$0xff]
    %v1352 = vld [vmem:[%s1334 + $0x88] sm:$0xff]
    %v1353 = vld [vmem:[%s1334 + $0x90] sm:$0xff]
    %v1354 = vld [vmem:[%s1334 + $0x98] sm:$0xff]
    %v1355 = vld [vmem:[%s1334 + $0xa0] sm:$0xff]
    %v1356 = vld [vmem:[%s1334 + $0xa8] sm:$0xff]
    %v1357 = vld [vmem:[%s1334 + $0xb0] sm:$0xff]
    %v1358 = vld [vmem:[%s1334 + $0xb8] sm:$0xff]
    %v1359 = vld [vmem:[%s1334 + $0xc0] sm:$0xff]
    %v1360 = vld [vmem:[%s1334 + $0xc8] sm:$0xff]
    %v1361 = vld [vmem:[%s1334 + $0xd0] sm:$0xff]
    %v1362 = vld [vmem:[%s1334 + $0xd8] sm:$0xff]
    %v1363 = vld [vmem:[%s1334 + $0xe0] sm:$0xff]
    %v1364 = vld [vmem:[%s1334 + $0xe8] sm:$0xff]
    %v1365 = vld [vmem:[%s1334 + $0xf0] sm:$0xff]
    %v1366 = vld [vmem:[%s1334 + $0xf8] sm:$0xff]
    %1367 = vmatprep.subr.mxu0 %v1336
    %1368 = vmatpush1.msra.mxu0 %v1335
    %1369 = vmatprep.subr.mxu0 %v1338
    %1370 = vmatpush1.msra.mxu0 %v1337
    %1371 = vmatprep.subr.mxu0 %v1340
    %1372 = vmatpush1.msra.mxu0 %v1339
    %1373 = vmatprep.subr.mxu0 %v1342
    %1374 = vmatpush1.msra.mxu0 %v1341
    %1375 = vmatprep.subr.mxu0 %v1344
    %1376 = vmatpush1.msra.mxu0 %v1343
    %1377 = vmatprep.subr.mxu0 %v1346
    %1378 = vmatpush1.msra.mxu0 %v1345
    %1379 = vmatprep.subr.mxu0 %v1348
    %1380 = vmatpush1.msra.mxu0 %v1347
    %1381 = vmatprep.subr.mxu0 %v1350
    %1382 = vmatpush1.msra.mxu0 %v1349
    %1383 = vmatprep.subr.mxu0 %v1352
    %1384 = vmatpush1.msra.mxu0 %v1351
    %1385 = vmatprep.subr.mxu0 %v1354
    %1386 = vmatpush1.msra.mxu0 %v1353
    %1387 = vmatprep.subr.mxu0 %v1356
    %1388 = vmatpush1.msra.mxu0 %v1355
    %1389 = vmatprep.subr.mxu0 %v1358
    %1390 = vmatpush1.msra.mxu0 %v1357
    %1391 = vmatprep.subr.mxu0 %v1360
    %1392 = vmatpush1.msra.mxu0 %v1359
    %1393 = vmatprep.subr.mxu0 %v1362
    %1394 = vmatpush1.msra.mxu0 %v1361
    %1395 = vmatprep.subr.mxu0 %v1364
    %1396 = vmatpush1.msra.mxu0 %v1363
    %1397 = vmatprep.subr.mxu0 %v1366
    %1398 = vmatpush1.msra.mxu0 %v1365
    %1399 = vmatprep.subr.mxu0 0.0
    %1400 = vmatpush1.msra.mxu0 0.0
    %1401 = vmatprep.subr.mxu0 0.0
    %1402 = vmatpush1.msra.mxu0 0.0
    %1403 = vmatprep.subr.mxu0 0.0
    %1404 = vmatpush1.msra.mxu0 0.0
    %1405 = vmatprep.subr.mxu0 0.0
    %1406 = vmatpush1.msra.mxu0 0.0
    %1407 = vmatprep.subr.mxu0 0.0
    %1408 = vmatpush1.msra.mxu0 0.0
    %1409 = vmatprep.subr.mxu0 0.0
    %1410 = vmatpush1.msra.mxu0 0.0
    %1411 = vmatprep.subr.mxu0 0.0
    %1412 = vmatpush1.msra.mxu0 0.0
    %1413 = vmatprep.subr.mxu0 0.0
    %1414 = vmatpush1.msra.mxu0 0.0
    %1415 = vmatprep.subr.mxu0 0.0
    %1416 = vmatpush1.msra.mxu0 0.0
    %1417 = vmatprep.subr.mxu0 0.0
    %1418 = vmatpush1.msra.mxu0 0.0
    %1419 = vmatprep.subr.mxu0 0.0
    %1420 = vmatpush1.msra.mxu0 0.0
    %1421 = vmatprep.subr.mxu0 0.0
    %1422 = vmatpush1.msra.mxu0 0.0
    %1423 = vmatprep.subr.mxu0 0.0
    %1424 = vmatpush1.msra.mxu0 0.0
    %1425 = vmatprep.subr.mxu0 0.0
    %1426 = vmatpush1.msra.mxu0 0.0
    %1427 = vmatprep.subr.mxu0 0.0
    %1428 = vmatpush1.msra.mxu0 0.0
    %1429 = vmatprep.subr.mxu0 0.0
    %1430 = vmatpush1.msra.mxu0 0.0
    %1431 = vmatprep.mubr.f32.mxu0 0.0
    %1432 = vmatmul.mubr.f32.gmra.mrb[0].mxu0 %v1330
    %v1433 = vpop.f32.mrb[0].mxu0
    %v1434 = vadd.f32 0.0, %v1433
    %v1435 = vpop.f32.mrb[0].mxu0
    %v1436 = vadd.f32 0.0, %v1435
    %1437 = vmatprep.mubr.f32.mxu0 0.0
    %1438 = vmatmul.mubr.f32.gmra.mrb[0].mxu0 %v1331
    %v1439 = vpop.f32.mrb[0].mxu0
    %v1440 = vadd.f32 0.0, %v1439
    %v1441 = vpop.f32.mrb[0].mxu0
    %v1442 = vadd.f32 0.0, %v1441
    %1443 = vmatprep.mubr.f32.mxu0 0.0
    %1444 = vmatmul.mubr.f32.gmra.mrb[0].mxu0 %v1332
    %v1445 = vpop.f32.mrb[0].mxu0
    %v1446 = vadd.f32 0.0, %v1445
    %v1447 = vpop.f32.mrb[0].mxu0
    %v1448 = vadd.f32 0.0, %v1447
    %1449 = vmatprep.mubr.f32.mxu0 0.0
    %1450 = vmatmul.mubr.f32.gmra.mrb[0].mxu0 %v1333
    %v1451 = vpop.f32.mrb[0].mxu0
    %v1452 = vadd.f32 0.0, %v1451
    %v1453 = vpop.f32.mrb[0].mxu0
    %v1454 = vadd.f32 0.0, %v1453
    %1455 = vdwg.mxu0
    %v1456 = vsel %vm1178, %v1452, 0.0
    %v1457 = vsel %vm1179, %v1434, 0.0
    %v1458 = vsel %vm1178, %v1440, 0.0
    %v1459 = vsel %vm1179, %v1446, 0.0
    %v1460 = vadd.f32 %v1456, %v1436
    %v1461 = vadd.f32 %v1457, %v1442
    %v1462 = vadd.f32 %v1458, %v1448
    %v1463 = vadd.f32 %v1459, %v1454
    %s1464 = scalar_lea.vmem %s5, 3
    %v1465 = vld [vmem:[%s1464] sm:$0x1]
    %v1467 = vlaneseq
    %v1468 = vshrl.u32 %v1467, 7
    %v1469 = vsub.s32 0, %v1468
    %v1470 = vrot.slane %v1465, %v1469
    %v1472 = vadd.f32 %v1460, %v1470
    %v1473 = vadd.f32 %v1461, %v1470
    %v1474 = vadd.f32 %v1462, %v1470
    %v1475 = vadd.f32 %v1463, %v1470
    %vm1476 = vcmp.gt.f32.partialorder %v1472, 0.0
    %vm1477 = vcmp.gt.f32.partialorder %v1473, 0.0
    %vm1478 = vcmp.gt.f32.partialorder %v1474, 0.0
    %vm1479 = vcmp.gt.f32.partialorder %v1475, 0.0
    %v1480 = vmul.f32 %v1472, 0.01
    %v1481 = vmul.f32 %v1473, 0.01
    %v1482 = vmul.f32 %v1474, 0.01
    %v1483 = vmul.f32 %v1475, 0.01
    %v1484 = vsel %vm1476, %v1472, %v1480
    %v1485 = vsel %vm1477, %v1473, %v1481
    %v1486 = vsel %vm1478, %v1474, %v1482
    %v1487 = vsel %vm1479, %v1475, %v1483
    %v1488 = vadd.f32 %v1484, %v1174
    %v1489 = vadd.f32 %v1485, %v1175
    %v1490 = vadd.f32 %v1486, %v1176
    %v1491 = vadd.f32 %v1487, %v1177
    %s1492 = smul.u32 0, 2
    %s1493 = sld [smem:[#allocation3 + %s1492]]
    %s1494 = ssub.s32 %s1493, 1
    %p1495 = scmp.gt.s32.totalorder %s1494, 0
    %s1496 = scalar_select %p1495, %s1494, 0
    %p1497 = scmp.lt.s32.totalorder %s1496, 15
    %s1498 = scalar_select %p1497, %s1496, 15
    %v1499 = vstv %s1498
    %vm1500 = vcmp.eq.s32.totalorder %v71, %v1499
    %vm1501 = vcmp.eq.s32.totalorder %v72, %v1499
    %v1502 = vsel %vm1500, %v1488, 0.0
    %v1503 = vsel %vm1501, %v1489, 0.0
    %v1504 = vadd.f32 %v1502, %v1503
    %v1505 = vrot.slane %v1504, 4
    %v1506 = vadd.f32 %v1504, %v1505
    %v1507 = vrot.slane %v1506, 2
    %v1508 = vadd.f32 %v1506, %v1507
    %v1509 = vrot.slane %v1508, 1
    %v1510 = vadd.f32 %v1508, %v1509
    %s1511 = sadd.s32 %s1492, 1
    %s1512 = sld [smem:[#allocation3 + %s1511]]
    %s1513 = ssub.s32 %s1512, 1
    %p1514 = scmp.gt.s32.totalorder %s1513, 0
    %s1515 = scalar_select %p1514, %s1513, 0
    %p1516 = scmp.lt.s32.totalorder %s1515, 15
    %s1517 = scalar_select %p1516, %s1515, 15
    %v1518 = vstv %s1517
    %vm1519 = vcmp.eq.s32.totalorder %v71, %v1518
    %vm1520 = vcmp.eq.s32.totalorder %v72, %v1518
    %v1521 = vsel %vm1519, %v1490, 0.0
    %v1522 = vsel %vm1520, %v1491, 0.0
    %v1523 = vadd.f32 %v1521, %v1522
    %v1524 = vrot.slane %v1523, 4
    %v1525 = vadd.f32 %v1523, %v1524
    %v1526 = vrot.slane %v1525, 2
    %v1527 = vadd.f32 %v1525, %v1526
    %v1528 = vrot.slane %v1527, 1
    %v1529 = vadd.f32 %v1527, %v1528
    %vm1530 = vcmask 1040384
    %v1531 = vsel %vm1530, %v1510, %v1529
    %1532 = vst [vmem:[#allocation10] sm:$0x3] %v1531
    // Predicated region
    $region38: #{tpu_custom_call.1} parent=1 // pred_check
      _
    $region39: #{tpu_custom_call.1} parent=1 // pred_check_branch
      %1534 = sbr.rel (0) target = $region41
    $region40: #{tpu_custom_call.1} parent=1 // pred_region
      %s1536 = ssub.s32 32, 32
      %1537 = vsyncadd [#allocation6], %s1536
      %s1539 = sshll.u32 [#allocation10], 4
      %s1540 = int_to_ptr.vmem [resolvable:$true] %s1539
      %1542 = dma.vmem_to_hbm [thread:$0]  %s1540, 32, %s7, [#allocation6]
    $region41: #{tpu_custom_call.1} parent=1 // pred_fallthru
      _
    // Predicated region
    $region42: #{tpu_custom_call.1} parent=1 // pred_check
      _
    $region43: #{tpu_custom_call.1} parent=1 // pred_check_branch
      %1544 = sbr.rel (0) target = $region45
    $region44: #{tpu_custom_call.1} parent=1 // pred_region
      %1545 = dma.done [#allocation6], 32
    $region45: #{tpu_custom_call.1} parent=1 // pred_fallthru
      _
    %1546 = vsyncpa [#allocation5], 1
    %1547 = vsyncpa [#allocation8], 1
    %1548 = vsyncpa [#allocation6], 1

</llo_original>
